<compile_context>
chip_gen: v6e
topology: v6e:2x2x1
jax: 0.10.0
libtpu: 0.0.40
codegen_flags: <defaults>
</compile_context>

<pallas_src>
import jax
import jax.numpy as jnp
from jax import lax
from jax.experimental import pallas as pl
from jax.experimental.pallas import tpu as pltpu


def _round_up(n, m):
    return n + (-n) % m


def _make_cbr2_kernel(H, W, nb, cin_p, cout_p):
    HW = H * W
    L = nb * HW
    taps = [(dy, dx) for dy in range(3) for dx in range(3)]

    def kernel(x_ref, mask_ref, w1_ref, b1_ref, w2_ref, b2_ref, o_ref,
               p1_ref, p2_ref):
        # x_ref   : (nb, cin_p, HW)   batch block; spatial on the 128-lane axis.
        # mask_ref: (9, nb*HW) f32    {0,1} per-tap boundary masks (period HW).
        # w*_ref  : (cout_p, 9*c)     BN-scale-folded weights, k = (dy*3+dx)*c + ci.
        # b*_ref  : (cout_p, 1)       folded BN bias.
        # o_ref   : (nb, cout_p, HW)
        # p1/p2   : (9*c, nb*HW)      im2col scratch (sublane/lane aligned writes).
        mask = mask_ref[...]                                    # (9, L)

        # ---- layer 1: im2col via masked lane-rolls (per image) -------------
        for b in range(nb):
            xb = x_ref[b].astype(jnp.float32)                   # (cin_p, HW)
            for t, (dy, dx) in enumerate(taps):
                off = (dy - 1) * W + (dx - 1)
                if off == 0:
                    piece = xb                                  # centre tap: mask == 1
                else:
                    piece = (pltpu.roll(xb, (-off) % HW, axis=1)
                             * mask[t:t + 1, :HW])
                p1_ref[t * cin_p:(t + 1) * cin_p,
                       b * HW:(b + 1) * HW] = piece

        # One MXU push per layer: (cout_p, 9*cin_p) @ (9*cin_p, nb*HW).
        # M = cout_p and K = 9*cin_p are tiny -> MXU is shape-starved; only
        # the lane (N = nb*HW) dimension is widened (by batch folding above).
        y1 = jnp.dot(w1_ref[...], p1_ref[...],
                     preferred_element_type=jnp.float32)
        y1 = jnp.maximum(y1 + b1_ref[...], 0.0)                 # (cout_p, L)

        # ---- layer 2: rolls act on the whole lane-concatenated activation;
        # the per-image masks already zero every cross-image / wrapped lane. --
        for t, (dy, dx) in enumerate(taps):
            off = (dy - 1) * W + (dx - 1)
            if off == 0:
                piece = y1
            else:
                piece = pltpu.roll(y1, (-off) % L, axis=1) * mask[t:t + 1, :]
            p2_ref[t * cout_p:(t + 1) * cout_p, :] = piece

        y2 = jnp.dot(w2_ref[...], p2_ref[...],
                     preferred_element_type=jnp.float32)
        y2 = jnp.maximum(y2 + b2_ref[...], 0.0)                 # (cout_p, L)

        for b in range(nb):
            o_ref[b, :, :] = y2[:, b * HW:(b + 1) * HW].astype(o_ref.dtype)

    return kernel


def _fold_conv_bn(w_oihw, bn_scale, bn_bias, cin_p, cout_p):
    """Fold eval-mode BN scale into conv weights; pad & reshape for the matmul."""
    cout, cin = w_oihw.shape[0], w_oihw.shape[1]
    w = w_oihw.astype(jnp.float32) * bn_scale.astype(jnp.float32)[:, None, None, None]
    # (Cout, Cin, ky, kx) -> (Cout, ky, kx, Cin); pad channels to the sublane tile.
    w = jnp.transpose(w, (0, 2, 3, 1))
    w = jnp.pad(w, ((0, cout_p - cout), (0, 0), (0, 0), (0, cin_p - cin)))
    w_mat = w.reshape(cout_p, 9 * cin_p)            # k = (dy*3 + dx)*cin_p + c
    b = jnp.pad(bn_bias.astype(jnp.float32), (0, cout_p - cout)).reshape(cout_p, 1)
    return w_mat, b


def _build_tap_masks(H, W, nb):
    """(9, nb*H*W) f32 {0,1}: 1 where tap (dy,dx) stays inside its own image."""
    HW = H * W
    pos = jnp.arange(HW, dtype=jnp.int32)
    hh = pos // W
    ww = pos - hh * W
    rows = []
    for dy in range(3):
        for dx in range(3):
            hv = hh + (dy - 1)
            wv = ww + (dx - 1)
            rows.append(((hv >= 0) & (hv < H) & (wv >= 0) & (wv < W))
                        .astype(jnp.float32))
    return jnp.tile(jnp.stack(rows, axis=0), (1, nb))   # periodic with period HW


def cbr2_forward(x_nchw, params, *, batch_block=None):
    """Pallas implementation of CBR_2.forward (NCHW in / NCHW out)."""
    N, Cin, H, W = x_nchw.shape
    Cout = params["w1"].shape[0]
    HW = H * W

    if batch_block is None:
        # One lane-folded block per TensorCore: fully fold the batch into one
        # grid step on 1-TC chips (v5e/v6e); keep 2 parallel grid steps on v7x
        # so both TensorCores get work.
        try:
            kind = jax.devices()[0].device_kind.lower()
        except Exception:
            kind = ""
        n_tc = 2 if ("v7" in kind or "7x" in kind) else 1
        n_blocks = max(1, min(N, n_tc))
        while N % n_blocks:
            n_blocks -= 1
        batch_block = N // n_blocks
    assert N % batch_block == 0
    nb = batch_block
    nblk = N // nb
    L = nb * HW

    cin_p = _round_up(Cin, 8)
    cout_p = _round_up(Cout, 8)

    w1m, b1 = _fold_conv_bn(params["w1"], params["s1"], params["b1"], cin_p, cout_p)
    w2m, b2 = _fold_conv_bn(params["w2"], params["s2"], params["b2"], cout_p, cout_p)
    masks = _build_tap_masks(H, W, nb)

    # Free reshape + tiny channel pad: spatial H*W stays on the 128-lane axis,
    # channels land on sublane-aligned (multiple-of-8) boundaries.
    x_flat = x_nchw.reshape(N, Cin, HW)
    if cin_p != Cin:
        x_flat = jnp.pad(x_flat, ((0, 0), (0, cin_p - Cin), (0, 0)))
    x_blocks = x_flat.reshape(nblk, nb, cin_p, HW)

    out = pl.pallas_call(
        _make_cbr2_kernel(H, W, nb, cin_p, cout_p),
        out_shape=jax.ShapeDtypeStruct((nblk, nb, cout_p, HW), x_nchw.dtype),
        grid_spec=pltpu.PrefetchScalarGridSpec(
            num_scalar_prefetch=0,
            grid=(nblk,),
            in_specs=[
                pl.BlockSpec((None, nb, cin_p, HW), lambda g: (g, 0, 0, 0)),
                pl.BlockSpec((9, L), lambda g: (0, 0)),
                pl.BlockSpec((cout_p, 9 * cin_p), lambda g: (0, 0)),
                pl.BlockSpec((cout_p, 1), lambda g: (0, 0)),
                pl.BlockSpec((cout_p, 9 * cout_p), lambda g: (0, 0)),
                pl.BlockSpec((cout_p, 1), lambda g: (0, 0)),
            ],
            out_specs=pl.BlockSpec((None, nb, cout_p, HW), lambda g: (g, 0, 0, 0)),
            scratch_shapes=[
                pltpu.VMEM((9 * cin_p, L), jnp.float32),    # layer-1 im2col
                pltpu.VMEM((9 * cout_p, L), jnp.float32),   # layer-2 im2col
            ],
        ),
        compiler_params=pltpu.CompilerParams(
            dimension_semantics=("parallel",)),
    )(x_blocks, masks, w1m, b1, w2m, b2)

    out = out.reshape(N, cout_p, H, W)
    if cout_p != Cout:
        out = out[:, :Cout]
    return out


def fold_bn(gamma, beta, running_mean, running_var, eps=1e-5):
    scale = gamma / jnp.sqrt(running_var + eps)
    bias = beta - running_mean * scale
    return scale, bias


def ref_block(x_nchw, w, scale, bias):
    y = lax.conv_general_dilated(
        x_nchw, w, window_strides=(1, 1), padding=((1, 1), (1, 1)),
        dimension_numbers=("NCHW", "OIHW", "NCHW"))
    y = y * scale[None, :, None, None] + bias[None, :, None, None]
    return jnp.maximum(y, 0.0)


def cbr2_reference(x_nchw, params):
    y = ref_block(x_nchw, params["w1"], params["s1"], params["b1"])
    y = ref_block(y, params["w2"], params["s2"], params["b2"])
    return y


if __name__ == "__main__":
    N, Cin, Cout, H, W = 2, 4, 8, 16, 16
    key = jax.random.PRNGKey(0)
    ks = jax.random.split(key, 11)

    # Deterministic synthetic parameters (shapes from the module __init__).
    w1 = jax.random.normal(ks[0], (Cout, Cin, 3, 3), jnp.float32) * 0.1
    w2 = jax.random.normal(ks[1], (Cout, Cout, 3, 3), jnp.float32) * 0.1
    g1 = 1.0 + 0.1 * jax.random.normal(ks[2], (Cout,), jnp.float32)
    b1 = 0.1 * jax.random.normal(ks[3], (Cout,), jnp.float32)
    m1 = 0.1 * jax.random.normal(ks[4], (Cout,), jnp.float32)
    v1 = jax.random.uniform(ks[5], (Cout,), jnp.float32, 0.5, 1.5)
    g2 = 1.0 + 0.1 * jax.random.normal(ks[6], (Cout,), jnp.float32)
    b2 = 0.1 * jax.random.normal(ks[7], (Cout,), jnp.float32)
    m2 = 0.1 * jax.random.normal(ks[8], (Cout,), jnp.float32)
    v2 = jax.random.uniform(ks[9], (Cout,), jnp.float32, 0.5, 1.5)

    s1, bb1 = fold_bn(g1, b1, m1, v1)
    s2, bb2 = fold_bn(g2, b2, m2, v2)
    params = {"w1": w1, "s1": s1, "b1": bb1,
              "w2": w2, "s2": s2, "b2": bb2}

    x = jax.random.normal(ks[10], (N, Cin, H, W), jnp.float32)

    out = jax.block_until_ready(cbr2_forward(x, params))
    ref = jax.block_until_ready(cbr2_reference(x, params))

    assert out.shape == (N, Cout, H, W)
    assert jnp.allclose(out, ref, atol=1e-4, rtol=1e-4), "mismatch vs reference"
    print("KERNEL_OK")
</pallas_src>

<mosaic_0001>
module attributes {stable_mosaic.version = 11 : i64} {
  func.func @kernel(%arg0: i32, %arg1: memref<1x2x8x256xf32, #tpu.memory_space<vmem>>, %arg2: memref<9x512xf32, #tpu.memory_space<vmem>>, %arg3: memref<8x72xf32, #tpu.memory_space<vmem>>, %arg4: memref<8x1xf32, #tpu.memory_space<vmem>>, %arg5: memref<8x72xf32, #tpu.memory_space<vmem>>, %arg6: memref<8x1xf32, #tpu.memory_space<vmem>>, %arg7: memref<1x2x8x256xf32, #tpu.memory_space<vmem>>, %arg8: memref<72x512xf32, #tpu.memory_space<vmem>>, %arg9: memref<72x512xf32, #tpu.memory_space<vmem>>) attributes {dimension_semantics = [#tpu.dimension_semantics<parallel>], iteration_bounds = array<i64: 1>, scalar_prefetch = 0 : i64, scratch_operands = 2 : i64, tpu.core_type = #tpu.core_type<tc>, window_params = [{transform_indices = @transform_0, window_bounds = array<i64: 1, 2, 8, 256>}, {pipeline_mode = #tpu.pipeline_mode<synchronous>, transform_indices = @transform_1, window_bounds = array<i64: 9, 512>}, {pipeline_mode = #tpu.pipeline_mode<synchronous>, transform_indices = @transform_2, window_bounds = array<i64: 8, 72>}, {pipeline_mode = #tpu.pipeline_mode<synchronous>, transform_indices = @transform_3, window_bounds = array<i64: 8, 1>}, {pipeline_mode = #tpu.pipeline_mode<synchronous>, transform_indices = @transform_4, window_bounds = array<i64: 8, 72>}, {pipeline_mode = #tpu.pipeline_mode<synchronous>, transform_indices = @transform_5, window_bounds = array<i64: 8, 1>}, {transform_indices = @transform_6, window_bounds = array<i64: 1, 2, 8, 256>}]} {
    %c0 = arith.constant 0 : index
    %c0_0 = arith.constant 0 : index
    %0 = vector.load %arg2[%c0, %c0_0] : memref<9x512xf32, #tpu.memory_space<vmem>>, vector<9x512xf32>
    %c0_1 = arith.constant 0 : index
    %c0_2 = arith.constant 0 : index
    %c0_3 = arith.constant 0 : index
    %c0_4 = arith.constant 0 : index
    %1 = vector.load %arg1[%c0_1, %c0_2, %c0_3, %c0_4] : memref<1x2x8x256xf32, #tpu.memory_space<vmem>>, vector<1x1x8x256xf32>
    %2 = vector.shape_cast %1 : vector<1x1x8x256xf32> to vector<8x256xf32>
    %c17_i32 = arith.constant 17 : i32
    %3 = tpu.dynamic_rotate %2 by %c17_i32 dim 1 : vector<8x256xf32>, i32 -> vector<8x256xf32>
    %4 = vector.extract_strided_slice %0 {offsets = [0, 0], sizes = [1, 256], strides = [1, 1]} : vector<9x512xf32> to vector<1x256xf32>
    %5 = vector.broadcast %4 : vector<1x256xf32> to vector<8x256xf32>
    %6 = arith.mulf %3, %5 : vector<8x256xf32>
    %c0_5 = arith.constant 0 : index
    %c0_6 = arith.constant 0 : index
    %7 = vector.load %arg8[%c0_5, %c0_6] : memref<72x512xf32, #tpu.memory_space<vmem>>, vector<8x256xf32>
    tpu.vector_store %arg8[%c0_5, %c0_6], %6 {strides = array<i32>} : memref<72x512xf32, #tpu.memory_space<vmem>>, vector<8x256xf32>,
    %c16_i32 = arith.constant 16 : i32
    %8 = tpu.dynamic_rotate %2 by %c16_i32 dim 1 : vector<8x256xf32>, i32 -> vector<8x256xf32>
    %9 = vector.extract_strided_slice %0 {offsets = [1, 0], sizes = [1, 256], strides = [1, 1]} : vector<9x512xf32> to vector<1x256xf32>
    %10 = vector.broadcast %9 : vector<1x256xf32> to vector<8x256xf32>
    %11 = arith.mulf %8, %10 : vector<8x256xf32>
    %c8 = arith.constant 8 : index
    %c0_7 = arith.constant 0 : index
    %12 = vector.load %arg8[%c8, %c0_7] : memref<72x512xf32, #tpu.memory_space<vmem>>, vector<8x256xf32>
    tpu.vector_store %arg8[%c8, %c0_7], %11 {strides = array<i32>} : memref<72x512xf32, #tpu.memory_space<vmem>>, vector<8x256xf32>,
    %c15_i32 = arith.constant 15 : i32
    %13 = tpu.dynamic_rotate %2 by %c15_i32 dim 1 : vector<8x256xf32>, i32 -> vector<8x256xf32>
    %14 = vector.extract_strided_slice %0 {offsets = [2, 0], sizes = [1, 256], strides = [1, 1]} : vector<9x512xf32> to vector<1x256xf32>
    %15 = vector.broadcast %14 : vector<1x256xf32> to vector<8x256xf32>
    %16 = arith.mulf %13, %15 : vector<8x256xf32>
    %c16 = arith.constant 16 : index
    %c0_8 = arith.constant 0 : index
    %17 = vector.load %arg8[%c16, %c0_8] : memref<72x512xf32, #tpu.memory_space<vmem>>, vector<8x256xf32>
    tpu.vector_store %arg8[%c16, %c0_8], %16 {strides = array<i32>} : memref<72x512xf32, #tpu.memory_space<vmem>>, vector<8x256xf32>,
    %c1_i32 = arith.constant 1 : i32
    %18 = tpu.dynamic_rotate %2 by %c1_i32 dim 1 : vector<8x256xf32>, i32 -> vector<8x256xf32>
    %19 = vector.extract_strided_slice %0 {offsets = [3, 0], sizes = [1, 256], strides = [1, 1]} : vector<9x512xf32> to vector<1x256xf32>
    %20 = vector.broadcast %19 : vector<1x256xf32> to vector<8x256xf32>
    %21 = arith.mulf %18, %20 : vector<8x256xf32>
    %c24 = arith.constant 24 : index
    %c0_9 = arith.constant 0 : index
    %22 = vector.load %arg8[%c24, %c0_9] : memref<72x512xf32, #tpu.memory_space<vmem>>, vector<8x256xf32>
    tpu.vector_store %arg8[%c24, %c0_9], %21 {strides = array<i32>} : memref<72x512xf32, #tpu.memory_space<vmem>>, vector<8x256xf32>,
    %c32 = arith.constant 32 : index
    %c0_10 = arith.constant 0 : index
    %23 = vector.load %arg8[%c32, %c0_10] : memref<72x512xf32, #tpu.memory_space<vmem>>, vector<8x256xf32>
    tpu.vector_store %arg8[%c32, %c0_10], %2 {strides = array<i32>} : memref<72x512xf32, #tpu.memory_space<vmem>>, vector<8x256xf32>,
    %c255_i32 = arith.constant 255 : i32
    %24 = tpu.dynamic_rotate %2 by %c255_i32 dim 1 : vector<8x256xf32>, i32 -> vector<8x256xf32>
    %25 = vector.extract_strided_slice %0 {offsets = [5, 0], sizes = [1, 256], strides = [1, 1]} : vector<9x512xf32> to vector<1x256xf32>
    %26 = vector.broadcast %25 : vector<1x256xf32> to vector<8x256xf32>
    %27 = arith.mulf %24, %26 : vector<8x256xf32>
    %c40 = arith.constant 40 : index
    %c0_11 = arith.constant 0 : index
    %28 = vector.load %arg8[%c40, %c0_11] : memref<72x512xf32, #tpu.memory_space<vmem>>, vector<8x256xf32>
    tpu.vector_store %arg8[%c40, %c0_11], %27 {strides = array<i32>} : memref<72x512xf32, #tpu.memory_space<vmem>>, vector<8x256xf32>,
    %c241_i32 = arith.constant 241 : i32
    %29 = tpu.dynamic_rotate %2 by %c241_i32 dim 1 : vector<8x256xf32>, i32 -> vector<8x256xf32>
    %30 = vector.extract_strided_slice %0 {offsets = [6, 0], sizes = [1, 256], strides = [1, 1]} : vector<9x512xf32> to vector<1x256xf32>
    %31 = vector.broadcast %30 : vector<1x256xf32> to vector<8x256xf32>
    %32 = arith.mulf %29, %31 : vector<8x256xf32>
    %c48 = arith.constant 48 : index
    %c0_12 = arith.constant 0 : index
    %33 = vector.load %arg8[%c48, %c0_12] : memref<72x512xf32, #tpu.memory_space<vmem>>, vector<8x256xf32>
    tpu.vector_store %arg8[%c48, %c0_12], %32 {strides = array<i32>} : memref<72x512xf32, #tpu.memory_space<vmem>>, vector<8x256xf32>,
    %c240_i32 = arith.constant 240 : i32
    %34 = tpu.dynamic_rotate %2 by %c240_i32 dim 1 : vector<8x256xf32>, i32 -> vector<8x256xf32>
    %35 = vector.extract_strided_slice %0 {offsets = [7, 0], sizes = [1, 256], strides = [1, 1]} : vector<9x512xf32> to vector<1x256xf32>
    %36 = vector.broadcast %35 : vector<1x256xf32> to vector<8x256xf32>
    %37 = arith.mulf %34, %36 : vector<8x256xf32>
    %c56 = arith.constant 56 : index
    %c0_13 = arith.constant 0 : index
    %38 = vector.load %arg8[%c56, %c0_13] : memref<72x512xf32, #tpu.memory_space<vmem>>, vector<8x256xf32>
    tpu.vector_store %arg8[%c56, %c0_13], %37 {strides = array<i32>} : memref<72x512xf32, #tpu.memory_space<vmem>>, vector<8x256xf32>,
    %c239_i32 = arith.constant 239 : i32
    %39 = tpu.dynamic_rotate %2 by %c239_i32 dim 1 : vector<8x256xf32>, i32 -> vector<8x256xf32>
    %40 = vector.extract_strided_slice %0 {offsets = [8, 0], sizes = [1, 256], strides = [1, 1]} : vector<9x512xf32> to vector<1x256xf32>
    %41 = vector.broadcast %40 : vector<1x256xf32> to vector<8x256xf32>
    %42 = arith.mulf %39, %41 : vector<8x256xf32>
    %c64 = arith.constant 64 : index
    %c0_14 = arith.constant 0 : index
    %43 = vector.load %arg8[%c64, %c0_14] : memref<72x512xf32, #tpu.memory_space<vmem>>, vector<8x256xf32>
    tpu.vector_store %arg8[%c64, %c0_14], %42 {strides = array<i32>} : memref<72x512xf32, #tpu.memory_space<vmem>>, vector<8x256xf32>,
    %c0_15 = arith.constant 0 : index
    %c1 = arith.constant 1 : index
    %c0_16 = arith.constant 0 : index
    %c0_17 = arith.constant 0 : index
    %44 = vector.load %arg1[%c0_15, %c1, %c0_16, %c0_17] : memref<1x2x8x256xf32, #tpu.memory_space<vmem>>, vector<1x1x8x256xf32>
    %45 = vector.shape_cast %44 : vector<1x1x8x256xf32> to vector<8x256xf32>
    %c17_i32_18 = arith.constant 17 : i32
    %46 = tpu.dynamic_rotate %45 by %c17_i32_18 dim 1 : vector<8x256xf32>, i32 -> vector<8x256xf32>
    %47 = vector.extract_strided_slice %0 {offsets = [0, 0], sizes = [1, 256], strides = [1, 1]} : vector<9x512xf32> to vector<1x256xf32>
    %48 = vector.broadcast %47 : vector<1x256xf32> to vector<8x256xf32>
    %49 = arith.mulf %46, %48 : vector<8x256xf32>
    %c0_19 = arith.constant 0 : index
    %c256 = arith.constant 256 : index
    %50 = vector.load %arg8[%c0_19, %c256] : memref<72x512xf32, #tpu.memory_space<vmem>>, vector<8x256xf32>
    tpu.vector_store %arg8[%c0_19, %c256], %49 {strides = array<i32>} : memref<72x512xf32, #tpu.memory_space<vmem>>, vector<8x256xf32>,
    %c16_i32_20 = arith.constant 16 : i32
    %51 = tpu.dynamic_rotate %45 by %c16_i32_20 dim 1 : vector<8x256xf32>, i32 -> vector<8x256xf32>
    %52 = vector.extract_strided_slice %0 {offsets = [1, 0], sizes = [1, 256], strides = [1, 1]} : vector<9x512xf32> to vector<1x256xf32>
    %53 = vector.broadcast %52 : vector<1x256xf32> to vector<8x256xf32>
    %54 = arith.mulf %51, %53 : vector<8x256xf32>
    %c8_21 = arith.constant 8 : index
    %c256_22 = arith.constant 256 : index
    %55 = vector.load %arg8[%c8_21, %c256_22] : memref<72x512xf32, #tpu.memory_space<vmem>>, vector<8x256xf32>
    tpu.vector_store %arg8[%c8_21, %c256_22], %54 {strides = array<i32>} : memref<72x512xf32, #tpu.memory_space<vmem>>, vector<8x256xf32>,
    %c15_i32_23 = arith.constant 15 : i32
    %56 = tpu.dynamic_rotate %45 by %c15_i32_23 dim 1 : vector<8x256xf32>, i32 -> vector<8x256xf32>
    %57 = vector.extract_strided_slice %0 {offsets = [2, 0], sizes = [1, 256], strides = [1, 1]} : vector<9x512xf32> to vector<1x256xf32>
    %58 = vector.broadcast %57 : vector<1x256xf32> to vector<8x256xf32>
    %59 = arith.mulf %56, %58 : vector<8x256xf32>
    %c16_24 = arith.constant 16 : index
    %c256_25 = arith.constant 256 : index
    %60 = vector.load %arg8[%c16_24, %c256_25] : memref<72x512xf32, #tpu.memory_space<vmem>>, vector<8x256xf32>
    tpu.vector_store %arg8[%c16_24, %c256_25], %59 {strides = array<i32>} : memref<72x512xf32, #tpu.memory_space<vmem>>, vector<8x256xf32>,
    %c1_i32_26 = arith.constant 1 : i32
    %61 = tpu.dynamic_rotate %45 by %c1_i32_26 dim 1 : vector<8x256xf32>, i32 -> vector<8x256xf32>
    %62 = vector.extract_strided_slice %0 {offsets = [3, 0], sizes = [1, 256], strides = [1, 1]} : vector<9x512xf32> to vector<1x256xf32>
    %63 = vector.broadcast %62 : vector<1x256xf32> to vector<8x256xf32>
    %64 = arith.mulf %61, %63 : vector<8x256xf32>
    %c24_27 = arith.constant 24 : index
    %c256_28 = arith.constant 256 : index
    %65 = vector.load %arg8[%c24_27, %c256_28] : memref<72x512xf32, #tpu.memory_space<vmem>>, vector<8x256xf32>
    tpu.vector_store %arg8[%c24_27, %c256_28], %64 {strides = array<i32>} : memref<72x512xf32, #tpu.memory_space<vmem>>, vector<8x256xf32>,
    %c32_29 = arith.constant 32 : index
    %c256_30 = arith.constant 256 : index
    %66 = vector.load %arg8[%c32_29, %c256_30] : memref<72x512xf32, #tpu.memory_space<vmem>>, vector<8x256xf32>
    tpu.vector_store %arg8[%c32_29, %c256_30], %45 {strides = array<i32>} : memref<72x512xf32, #tpu.memory_space<vmem>>, vector<8x256xf32>,
    %c255_i32_31 = arith.constant 255 : i32
    %67 = tpu.dynamic_rotate %45 by %c255_i32_31 dim 1 : vector<8x256xf32>, i32 -> vector<8x256xf32>
    %68 = vector.extract_strided_slice %0 {offsets = [5, 0], sizes = [1, 256], strides = [1, 1]} : vector<9x512xf32> to vector<1x256xf32>
    %69 = vector.broadcast %68 : vector<1x256xf32> to vector<8x256xf32>
    %70 = arith.mulf %67, %69 : vector<8x256xf32>
    %c40_32 = arith.constant 40 : index
    %c256_33 = arith.constant 256 : index
    %71 = vector.load %arg8[%c40_32, %c256_33] : memref<72x512xf32, #tpu.memory_space<vmem>>, vector<8x256xf32>
    tpu.vector_store %arg8[%c40_32, %c256_33], %70 {strides = array<i32>} : memref<72x512xf32, #tpu.memory_space<vmem>>, vector<8x256xf32>,
    %c241_i32_34 = arith.constant 241 : i32
    %72 = tpu.dynamic_rotate %45 by %c241_i32_34 dim 1 : vector<8x256xf32>, i32 -> vector<8x256xf32>
    %73 = vector.extract_strided_slice %0 {offsets = [6, 0], sizes = [1, 256], strides = [1, 1]} : vector<9x512xf32> to vector<1x256xf32>
    %74 = vector.broadcast %73 : vector<1x256xf32> to vector<8x256xf32>
    %75 = arith.mulf %72, %74 : vector<8x256xf32>
    %c48_35 = arith.constant 48 : index
    %c256_36 = arith.constant 256 : index
    %76 = vector.load %arg8[%c48_35, %c256_36] : memref<72x512xf32, #tpu.memory_space<vmem>>, vector<8x256xf32>
    tpu.vector_store %arg8[%c48_35, %c256_36], %75 {strides = array<i32>} : memref<72x512xf32, #tpu.memory_space<vmem>>, vector<8x256xf32>,
    %c240_i32_37 = arith.constant 240 : i32
    %77 = tpu.dynamic_rotate %45 by %c240_i32_37 dim 1 : vector<8x256xf32>, i32 -> vector<8x256xf32>
    %78 = vector.extract_strided_slice %0 {offsets = [7, 0], sizes = [1, 256], strides = [1, 1]} : vector<9x512xf32> to vector<1x256xf32>
    %79 = vector.broadcast %78 : vector<1x256xf32> to vector<8x256xf32>
    %80 = arith.mulf %77, %79 : vector<8x256xf32>
    %c56_38 = arith.constant 56 : index
    %c256_39 = arith.constant 256 : index
    %81 = vector.load %arg8[%c56_38, %c256_39] : memref<72x512xf32, #tpu.memory_space<vmem>>, vector<8x256xf32>
    tpu.vector_store %arg8[%c56_38, %c256_39], %80 {strides = array<i32>} : memref<72x512xf32, #tpu.memory_space<vmem>>, vector<8x256xf32>,
    %c239_i32_40 = arith.constant 239 : i32
    %82 = tpu.dynamic_rotate %45 by %c239_i32_40 dim 1 : vector<8x256xf32>, i32 -> vector<8x256xf32>
    %83 = vector.extract_strided_slice %0 {offsets = [8, 0], sizes = [1, 256], strides = [1, 1]} : vector<9x512xf32> to vector<1x256xf32>
    %84 = vector.broadcast %83 : vector<1x256xf32> to vector<8x256xf32>
    %85 = arith.mulf %82, %84 : vector<8x256xf32>
    %c64_41 = arith.constant 64 : index
    %c256_42 = arith.constant 256 : index
    %86 = vector.load %arg8[%c64_41, %c256_42] : memref<72x512xf32, #tpu.memory_space<vmem>>, vector<8x256xf32>
    tpu.vector_store %arg8[%c64_41, %c256_42], %85 {strides = array<i32>} : memref<72x512xf32, #tpu.memory_space<vmem>>, vector<8x256xf32>,
    %c0_43 = arith.constant 0 : index
    %c0_44 = arith.constant 0 : index
    %87 = vector.load %arg3[%c0_43, %c0_44] : memref<8x72xf32, #tpu.memory_space<vmem>>, vector<8x72xf32>
    %c0_45 = arith.constant 0 : index
    %c0_46 = arith.constant 0 : index
    %88 = vector.load %arg8[%c0_45, %c0_46] : memref<72x512xf32, #tpu.memory_space<vmem>>, vector<72x512xf32>
    %cst = arith.constant dense<0.000000e+00> : vector<8x512xf32>
    %89 = tpu.matmul %87, %88, %cst {dimension_numbers = #tpu.dot_dimension_numbers<[1], [0], [0], [1], [0, 0, 1, 1], [], []>} : vector<8x72xf32>, vector<72x512xf32>, vector<8x512xf32> -> vector<8x512xf32>
    %c0_47 = arith.constant 0 : index
    %c0_48 = arith.constant 0 : index
    %90 = vector.load %arg4[%c0_47, %c0_48] : memref<8x1xf32, #tpu.memory_space<vmem>>, vector<8x1xf32>
    %91 = vector.broadcast %90 : vector<8x1xf32> to vector<8x512xf32>
    %92 = arith.addf %89, %91 : vector<8x512xf32>
    %cst_49 = arith.constant 0.000000e+00 : f32
    %93 = vector.broadcast %cst_49 : f32 to vector<8x512xf32>
    %94 = arith.maximumf %92, %93 : vector<8x512xf32>
    %c17_i32_50 = arith.constant 17 : i32
    %95 = tpu.dynamic_rotate %94 by %c17_i32_50 dim 1 : vector<8x512xf32>, i32 -> vector<8x512xf32>
    %96 = vector.extract_strided_slice %0 {offsets = [0, 0], sizes = [1, 512], strides = [1, 1]} : vector<9x512xf32> to vector<1x512xf32>
    %97 = vector.broadcast %96 : vector<1x512xf32> to vector<8x512xf32>
    %98 = arith.mulf %95, %97 : vector<8x512xf32>
    %c0_51 = arith.constant 0 : index
    %c0_52 = arith.constant 0 : index
    %99 = vector.load %arg9[%c0_51, %c0_52] : memref<72x512xf32, #tpu.memory_space<vmem>>, vector<8x512xf32>
    tpu.vector_store %arg9[%c0_51, %c0_52], %98 {strides = array<i32>} : memref<72x512xf32, #tpu.memory_space<vmem>>, vector<8x512xf32>,
    %c16_i32_53 = arith.constant 16 : i32
    %100 = tpu.dynamic_rotate %94 by %c16_i32_53 dim 1 : vector<8x512xf32>, i32 -> vector<8x512xf32>
    %101 = vector.extract_strided_slice %0 {offsets = [1, 0], sizes = [1, 512], strides = [1, 1]} : vector<9x512xf32> to vector<1x512xf32>
    %102 = vector.broadcast %101 : vector<1x512xf32> to vector<8x512xf32>
    %103 = arith.mulf %100, %102 : vector<8x512xf32>
    %c8_54 = arith.constant 8 : index
    %c0_55 = arith.constant 0 : index
    %104 = vector.load %arg9[%c8_54, %c0_55] : memref<72x512xf32, #tpu.memory_space<vmem>>, vector<8x512xf32>
    tpu.vector_store %arg9[%c8_54, %c0_55], %103 {strides = array<i32>} : memref<72x512xf32, #tpu.memory_space<vmem>>, vector<8x512xf32>,
    %c15_i32_56 = arith.constant 15 : i32
    %105 = tpu.dynamic_rotate %94 by %c15_i32_56 dim 1 : vector<8x512xf32>, i32 -> vector<8x512xf32>
    %106 = vector.extract_strided_slice %0 {offsets = [2, 0], sizes = [1, 512], strides = [1, 1]} : vector<9x512xf32> to vector<1x512xf32>
    %107 = vector.broadcast %106 : vector<1x512xf32> to vector<8x512xf32>
    %108 = arith.mulf %105, %107 : vector<8x512xf32>
    %c16_57 = arith.constant 16 : index
    %c0_58 = arith.constant 0 : index
    %109 = vector.load %arg9[%c16_57, %c0_58] : memref<72x512xf32, #tpu.memory_space<vmem>>, vector<8x512xf32>
    tpu.vector_store %arg9[%c16_57, %c0_58], %108 {strides = array<i32>} : memref<72x512xf32, #tpu.memory_space<vmem>>, vector<8x512xf32>,
    %c1_i32_59 = arith.constant 1 : i32
    %110 = tpu.dynamic_rotate %94 by %c1_i32_59 dim 1 : vector<8x512xf32>, i32 -> vector<8x512xf32>
    %111 = vector.extract_strided_slice %0 {offsets = [3, 0], sizes = [1, 512], strides = [1, 1]} : vector<9x512xf32> to vector<1x512xf32>
    %112 = vector.broadcast %111 : vector<1x512xf32> to vector<8x512xf32>
    %113 = arith.mulf %110, %112 : vector<8x512xf32>
    %c24_60 = arith.constant 24 : index
    %c0_61 = arith.constant 0 : index
    %114 = vector.load %arg9[%c24_60, %c0_61] : memref<72x512xf32, #tpu.memory_space<vmem>>, vector<8x512xf32>
    tpu.vector_store %arg9[%c24_60, %c0_61], %113 {strides = array<i32>} : memref<72x512xf32, #tpu.memory_space<vmem>>, vector<8x512xf32>,
    %c32_62 = arith.constant 32 : index
    %c0_63 = arith.constant 0 : index
    %115 = vector.load %arg9[%c32_62, %c0_63] : memref<72x512xf32, #tpu.memory_space<vmem>>, vector<8x512xf32>
    tpu.vector_store %arg9[%c32_62, %c0_63], %94 {strides = array<i32>} : memref<72x512xf32, #tpu.memory_space<vmem>>, vector<8x512xf32>,
    %c511_i32 = arith.constant 511 : i32
    %116 = tpu.dynamic_rotate %94 by %c511_i32 dim 1 : vector<8x512xf32>, i32 -> vector<8x512xf32>
    %117 = vector.extract_strided_slice %0 {offsets = [5, 0], sizes = [1, 512], strides = [1, 1]} : vector<9x512xf32> to vector<1x512xf32>
    %118 = vector.broadcast %117 : vector<1x512xf32> to vector<8x512xf32>
    %119 = arith.mulf %116, %118 : vector<8x512xf32>
    %c40_64 = arith.constant 40 : index
    %c0_65 = arith.constant 0 : index
    %120 = vector.load %arg9[%c40_64, %c0_65] : memref<72x512xf32, #tpu.memory_space<vmem>>, vector<8x512xf32>
    tpu.vector_store %arg9[%c40_64, %c0_65], %119 {strides = array<i32>} : memref<72x512xf32, #tpu.memory_space<vmem>>, vector<8x512xf32>,
    %c497_i32 = arith.constant 497 : i32
    %121 = tpu.dynamic_rotate %94 by %c497_i32 dim 1 : vector<8x512xf32>, i32 -> vector<8x512xf32>
    %122 = vector.extract_strided_slice %0 {offsets = [6, 0], sizes = [1, 512], strides = [1, 1]} : vector<9x512xf32> to vector<1x512xf32>
    %123 = vector.broadcast %122 : vector<1x512xf32> to vector<8x512xf32>
    %124 = arith.mulf %121, %123 : vector<8x512xf32>
    %c48_66 = arith.constant 48 : index
    %c0_67 = arith.constant 0 : index
    %125 = vector.load %arg9[%c48_66, %c0_67] : memref<72x512xf32, #tpu.memory_space<vmem>>, vector<8x512xf32>
    tpu.vector_store %arg9[%c48_66, %c0_67], %124 {strides = array<i32>} : memref<72x512xf32, #tpu.memory_space<vmem>>, vector<8x512xf32>,
    %c496_i32 = arith.constant 496 : i32
    %126 = tpu.dynamic_rotate %94 by %c496_i32 dim 1 : vector<8x512xf32>, i32 -> vector<8x512xf32>
    %127 = vector.extract_strided_slice %0 {offsets = [7, 0], sizes = [1, 512], strides = [1, 1]} : vector<9x512xf32> to vector<1x512xf32>
    %128 = vector.broadcast %127 : vector<1x512xf32> to vector<8x512xf32>
    %129 = arith.mulf %126, %128 : vector<8x512xf32>
    %c56_68 = arith.constant 56 : index
    %c0_69 = arith.constant 0 : index
    %130 = vector.load %arg9[%c56_68, %c0_69] : memref<72x512xf32, #tpu.memory_space<vmem>>, vector<8x512xf32>
    tpu.vector_store %arg9[%c56_68, %c0_69], %129 {strides = array<i32>} : memref<72x512xf32, #tpu.memory_space<vmem>>, vector<8x512xf32>,
    %c495_i32 = arith.constant 495 : i32
    %131 = tpu.dynamic_rotate %94 by %c495_i32 dim 1 : vector<8x512xf32>, i32 -> vector<8x512xf32>
    %132 = vector.extract_strided_slice %0 {offsets = [8, 0], sizes = [1, 512], strides = [1, 1]} : vector<9x512xf32> to vector<1x512xf32>
    %133 = vector.broadcast %132 : vector<1x512xf32> to vector<8x512xf32>
    %134 = arith.mulf %131, %133 : vector<8x512xf32>
    %c64_70 = arith.constant 64 : index
    %c0_71 = arith.constant 0 : index
    %135 = vector.load %arg9[%c64_70, %c0_71] : memref<72x512xf32, #tpu.memory_space<vmem>>, vector<8x512xf32>
    tpu.vector_store %arg9[%c64_70, %c0_71], %134 {strides = array<i32>} : memref<72x512xf32, #tpu.memory_space<vmem>>, vector<8x512xf32>,
    %c0_72 = arith.constant 0 : index
    %c0_73 = arith.constant 0 : index
    %136 = vector.load %arg5[%c0_72, %c0_73] : memref<8x72xf32, #tpu.memory_space<vmem>>, vector<8x72xf32>
    %c0_74 = arith.constant 0 : index
    %c0_75 = arith.constant 0 : index
    %137 = vector.load %arg9[%c0_74, %c0_75] : memref<72x512xf32, #tpu.memory_space<vmem>>, vector<72x512xf32>
    %cst_76 = arith.constant dense<0.000000e+00> : vector<8x512xf32>
    %138 = tpu.matmul %136, %137, %cst_76 {dimension_numbers = #tpu.dot_dimension_numbers<[1], [0], [0], [1], [0, 0, 1, 1], [], []>} : vector<8x72xf32>, vector<72x512xf32>, vector<8x512xf32> -> vector<8x512xf32>
    %c0_77 = arith.constant 0 : index
    %c0_78 = arith.constant 0 : index
    %139 = vector.load %arg6[%c0_77, %c0_78] : memref<8x1xf32, #tpu.memory_space<vmem>>, vector<8x1xf32>
    %140 = vector.broadcast %139 : vector<8x1xf32> to vector<8x512xf32>
    %141 = arith.addf %138, %140 : vector<8x512xf32>
    %cst_79 = arith.constant 0.000000e+00 : f32
    %142 = vector.broadcast %cst_79 : f32 to vector<8x512xf32>
    %143 = arith.maximumf %141, %142 : vector<8x512xf32>
    %144 = vector.extract_strided_slice %143 {offsets = [0, 0], sizes = [8, 256], strides = [1, 1]} : vector<8x512xf32> to vector<8x256xf32>
    %c0_80 = arith.constant 0 : index
    %c0_81 = arith.constant 0 : index
    %c0_82 = arith.constant 0 : index
    %c0_83 = arith.constant 0 : index
    %145 = vector.load %arg7[%c0_80, %c0_81, %c0_82, %c0_83] : memref<1x2x8x256xf32, #tpu.memory_space<vmem>>, vector<1x1x8x256xf32>
    %146 = vector.shape_cast %145 : vector<1x1x8x256xf32> to vector<8x256xf32>
    %147 = vector.shape_cast %144 : vector<8x256xf32> to vector<1x1x8x256xf32>
    tpu.vector_store %arg7[%c0_80, %c0_81, %c0_82, %c0_83], %147 {strides = array<i32>} : memref<1x2x8x256xf32, #tpu.memory_space<vmem>>, vector<1x1x8x256xf32>,
    %148 = vector.extract_strided_slice %143 {offsets = [0, 256], sizes = [8, 256], strides = [1, 1]} : vector<8x512xf32> to vector<8x256xf32>
    %c0_84 = arith.constant 0 : index
    %c1_85 = arith.constant 1 : index
    %c0_86 = arith.constant 0 : index
    %c0_87 = arith.constant 0 : index
    %149 = vector.load %arg7[%c0_84, %c1_85, %c0_86, %c0_87] : memref<1x2x8x256xf32, #tpu.memory_space<vmem>>, vector<1x1x8x256xf32>
    %150 = vector.shape_cast %149 : vector<1x1x8x256xf32> to vector<8x256xf32>
    %151 = vector.shape_cast %148 : vector<8x256xf32> to vector<1x1x8x256xf32>
    tpu.vector_store %arg7[%c0_84, %c1_85, %c0_86, %c0_87], %151 {strides = array<i32>} : memref<1x2x8x256xf32, #tpu.memory_space<vmem>>, vector<1x1x8x256xf32>,
    return
  }
  func.func @transform_0(%arg0: i32) -> (i32, i32, i32, i32) {
    %c0_i32 = arith.constant 0 : i32
    %c0_i32_0 = arith.constant 0 : i32
    %c0_i32_1 = arith.constant 0 : i32
    %c0_i32_2 = arith.constant 0 : i32
    return %arg0, %c0_i32, %c0_i32_0, %c0_i32_1 : i32, i32, i32, i32
  }
  func.func @transform_1(%arg0: i32) -> (i32, i32) {
    %c0_i32 = arith.constant 0 : i32
    %c0_i32_0 = arith.constant 0 : i32
    %c0_i32_1 = arith.constant 0 : i32
    return %c0_i32, %c0_i32_0 : i32, i32
  }
  func.func @transform_2(%arg0: i32) -> (i32, i32) {
    %c0_i32 = arith.constant 0 : i32
    %c0_i32_0 = arith.constant 0 : i32
    %c0_i32_1 = arith.constant 0 : i32
    return %c0_i32, %c0_i32_0 : i32, i32
  }
  func.func @transform_3(%arg0: i32) -> (i32, i32) {
    %c0_i32 = arith.constant 0 : i32
    %c0_i32_0 = arith.constant 0 : i32
    %c0_i32_1 = arith.constant 0 : i32
    return %c0_i32, %c0_i32_0 : i32, i32
  }
  func.func @transform_4(%arg0: i32) -> (i32, i32) {
    %c0_i32 = arith.constant 0 : i32
    %c0_i32_0 = arith.constant 0 : i32
    %c0_i32_1 = arith.constant 0 : i32
    return %c0_i32, %c0_i32_0 : i32, i32
  }
  func.func @transform_5(%arg0: i32) -> (i32, i32) {
    %c0_i32 = arith.constant 0 : i32
    %c0_i32_0 = arith.constant 0 : i32
    %c0_i32_1 = arith.constant 0 : i32
    return %c0_i32, %c0_i32_0 : i32, i32
  }
  func.func @transform_6(%arg0: i32) -> (i32, i32, i32, i32) {
    %c0_i32 = arith.constant 0 : i32
    %c0_i32_0 = arith.constant 0 : i32
    %c0_i32_1 = arith.constant 0 : i32
    %c0_i32_2 = arith.constant 0 : i32
    return %arg0, %c0_i32, %c0_i32_0, %c0_i32_1 : i32, i32, i32, i32
  }
}

</mosaic_0001>

<llo_original>
// kernel: tpu_custom_call.1
$region0: #{tpu_custom_call.1}
  #allocation0 [shape = 'u32[]', space=smem, size = 0x4, offset = 0x4, fixed_abs, tag = 'smem constant byte address 0x4 - core index']
  #allocation1 [shape = 'u32[144,128]{1,0:T(1,128)}', space=vmem, size = 0x12000, scoped, tag = 'internal scratch']
  #allocation2 [shape = 'f32[72,512]{1,0:T(8,128)}', space=vmem, size = 0x24000, scoped, tag = 'scratch operand']
  #allocation3 [shape = 'f32[72,512]{1,0:T(8,128)}', space=vmem, size = 0x24000, scoped, tag = 'scratch operand']
  %s0 = inlined_call_operand.hbm [shape: f32[1,2,8,256], index: 0, kind: input, shape index: {}]
  %s1 = inlined_call_operand.hbm [shape: f32[9,512], index: 1, kind: input, shape index: {}]
  %s2 = inlined_call_operand.vmem [shape: f32[8,72], index: 2, kind: input, shape index: {}]
  %s3 = inlined_call_operand.vmem [shape: f32[8,1], index: 3, kind: input, shape index: {}]
  %s4 = inlined_call_operand.vmem [shape: f32[8,72], index: 4, kind: input, shape index: {}]
  %s5 = inlined_call_operand.vmem [shape: f32[8,1], index: 5, kind: input, shape index: {}]
  %s6 = inlined_call_operand.hbm [shape: f32[1,2,8,256], index: 6, kind: output, shape index: {}]
  %s7 = sld [smem:[#allocation0]]
  $region42: #{tpu_custom_call.1} parent=0
    _
  %s9 = ssub.s32 1, %s7
  %s10 = scalar_select 0, %s9, %s7
  $region1: #{tpu_custom_call.1} parent=0
    #allocation4 [shape = 'u8[16384]{0}', space=vmem, size = 0x4000, scoped, tag = 'input window, operand 0, single buffered']
    #allocation5 [shape = 's32[1]{0}', space=sflag, size = 0x4, scoped, tag = 'scoped memory for tpu_custom_call.1']
    #allocation6 [shape = 's32[1]{0}', space=sflag, size = 0x4, scoped, tag = 'scoped memory for tpu_custom_call.1']
    #allocation7 [shape = 'u8[32768]{0}', space=vmem, size = 0x8000, scoped, tag = 'input window, operand 1, single buffered']
    #allocation8 [shape = 's32[1]{0}', space=sflag, size = 0x4, scoped, tag = 'scoped memory for tpu_custom_call.1']
    #allocation9 [shape = 'u8[16384]{0}', space=vmem, size = 0x4000, scoped, tag = 'output window, operand 0, single buffered']
    %11 = vsyncpa [#allocation5], 0
    %12 = vsyncpa [#allocation8], 0
    %13 = vsyncpa [#allocation6], 0
    // Predicated region
    $region2: #{tpu_custom_call.1} parent=1 // pred_check
      _
    $region3: #{tpu_custom_call.1} parent=1 // pred_check_branch
      %15 = sbr.rel (0) target = $region5
    $region4: #{tpu_custom_call.1} parent=1 // pred_region
      %s17 = ssub.s32 512, 512
      %18 = vsyncadd [#allocation5], %s17
      %s19 = sshll.u32 [#allocation4], 4
      %s20 = int_to_ptr.vmem [resolvable:$true] %s19
      %25 = dma.hbm_to_vmem [thread:$0]  %s0, 512, %s20, [#allocation5], 256, 256, 16
    $region5: #{tpu_custom_call.1} parent=1 // pred_fallthru
      _
    // Predicated region
    $region6: #{tpu_custom_call.1} parent=1 // pred_check
      _
    $region7: #{tpu_custom_call.1} parent=1 // pred_check_branch
      %27 = sbr.rel (0) target = $region9
    $region8: #{tpu_custom_call.1} parent=1 // pred_region
      %s29 = ssub.s32 1024, 1024
      %30 = vsyncadd [#allocation8], %s29
      %s31 = sshll.u32 [#allocation7], 4
      %s32 = int_to_ptr.vmem [resolvable:$true] %s31
      %37 = dma.hbm_to_vmem [thread:$0]  %s1, 1024, %s32, [#allocation8], 512, 512, 32
    $region9: #{tpu_custom_call.1} parent=1 // pred_fallthru
      _
    // Predicated region
    $region10: #{tpu_custom_call.1} parent=1 // pred_check
      _
    $region11: #{tpu_custom_call.1} parent=1 // pred_check_branch
      %39 = sbr.rel (0) target = $region13
    $region12: #{tpu_custom_call.1} parent=1 // pred_region
      _
    $region13: #{tpu_custom_call.1} parent=1 // pred_fallthru
      _
    // Predicated region
    $region14: #{tpu_custom_call.1} parent=1 // pred_check
      _
    $region15: #{tpu_custom_call.1} parent=1 // pred_check_branch
      %41 = sbr.rel (0) target = $region17
    $region16: #{tpu_custom_call.1} parent=1 // pred_region
      _
    $region17: #{tpu_custom_call.1} parent=1 // pred_fallthru
      _
    // Predicated region
    $region18: #{tpu_custom_call.1} parent=1 // pred_check
      _
    $region19: #{tpu_custom_call.1} parent=1 // pred_check_branch
      %43 = sbr.rel (0) target = $region21
    $region20: #{tpu_custom_call.1} parent=1 // pred_region
      _
    $region21: #{tpu_custom_call.1} parent=1 // pred_fallthru
      _
    // Predicated region
    $region22: #{tpu_custom_call.1} parent=1 // pred_check
      _
    $region23: #{tpu_custom_call.1} parent=1 // pred_check_branch
      %45 = sbr.rel (0) target = $region25
    $region24: #{tpu_custom_call.1} parent=1 // pred_region
      _
    $region25: #{tpu_custom_call.1} parent=1 // pred_fallthru
      _
    // Predicated region
    $region26: #{tpu_custom_call.1} parent=1 // pred_check
      _
    $region27: #{tpu_custom_call.1} parent=1 // pred_check_branch
      %47 = sbr.rel (0) target = $region29
    $region28: #{tpu_custom_call.1} parent=1 // pred_region
      %48 = dma.done [#allocation5], 512
    $region29: #{tpu_custom_call.1} parent=1 // pred_fallthru
      _
    // Predicated region
    $region30: #{tpu_custom_call.1} parent=1 // pred_check
      _
    $region31: #{tpu_custom_call.1} parent=1 // pred_check_branch
      %50 = sbr.rel (0) target = $region33
    $region32: #{tpu_custom_call.1} parent=1 // pred_region
      %51 = dma.done [#allocation8], 1024
    $region33: #{tpu_custom_call.1} parent=1 // pred_fallthru
      _
    %v52 = vld [vmem:[#allocation7] sm:$0xff]
    %v53 = vld [vmem:[#allocation7 + $0x8] sm:$0xff]
    %v54 = vld [vmem:[#allocation7 + $0x10] sm:$0xff]
    %v55 = vld [vmem:[#allocation7 + $0x18] sm:$0xff]
    %v56 = vld [vmem:[#allocation7 + $0x20] sm:$0x1]
    %v57 = vld [vmem:[#allocation7 + $0x28] sm:$0x1]
    %v58 = vld [vmem:[#allocation7 + $0x30] sm:$0x1]
    %v59 = vld [vmem:[#allocation7 + $0x38] sm:$0x1]
    %v60 = vld [vmem:[#allocation4] sm:$0xff]
    %v61 = vld [vmem:[#allocation4 + $0x8] sm:$0xff]
    %62 = vrot.lane.b32.xlu0 %v60, 17
    %v63 = vpop.permute.xlu0 %62
    %64 = vrot.lane.b32.xlu0 %v61, 17
    %v65 = vpop.permute.xlu0 %64
    %v66 = vlaneseq
    %v67 = vand.u32 %v66, 127
    %vm68 = vcmp.lt.s32.totalorder %v67, 17
    %v69 = vsel %vm68, %v63, %v65
    %v70 = vsel %vm68, %v65, %v63
    %v71 = vlaneseq
    %v72 = vshrl.u32 %v71, 7
    %v73 = vsub.s32 0, %v72
    %v74 = vrot.slane %v52, %v73
    %v75 = vlaneseq
    %v76 = vshrl.u32 %v75, 7
    %v77 = vsub.s32 0, %v76
    %v78 = vrot.slane %v53, %v77
    %v79 = vmul.f32 %v70, %v74
    %v80 = vmul.f32 %v69, %v78
    %81 = vst [vmem:[#allocation2] sm:$0xff] %v79
    %82 = vst [vmem:[#allocation2 + $0x8] sm:$0xff] %v80
    %83 = vrot.lane.b32.xlu0 %v60, 16
    %v84 = vpop.permute.xlu0 %83
    %85 = vrot.lane.b32.xlu0 %v61, 16
    %v86 = vpop.permute.xlu0 %85
    %vm87 = vcmp.lt.s32.totalorder %v67, 16
    %v88 = vsel %vm87, %v84, %v86
    %v89 = vsel %vm87, %v86, %v84
    %v90 = vlaneseq
    %v91 = vshrl.u32 %v90, 7
    %v92 = vsub.s32 1, %v91
    %v93 = vrot.slane %v52, %v92
    %v94 = vlaneseq
    %v95 = vshrl.u32 %v94, 7
    %v96 = vsub.s32 1, %v95
    %v97 = vrot.slane %v53, %v96
    %v98 = vmul.f32 %v89, %v93
    %v99 = vmul.f32 %v88, %v97
    %100 = vst [vmem:[#allocation2 + $0x20] sm:$0xff] %v98
    %101 = vst [vmem:[#allocation2 + $0x28] sm:$0xff] %v99
    %102 = vrot.lane.b32.xlu0 %v60, 15
    %v103 = vpop.permute.xlu0 %102
    %104 = vrot.lane.b32.xlu0 %v61, 15
    %v105 = vpop.permute.xlu0 %104
    %vm106 = vcmp.lt.s32.totalorder %v67, 15
    %v107 = vsel %vm106, %v103, %v105
    %v108 = vsel %vm106, %v105, %v103
    %v109 = vlaneseq
    %v110 = vshrl.u32 %v109, 7
    %v111 = vsub.s32 2, %v110
    %v112 = vrot.slane %v52, %v111
    %v113 = vlaneseq
    %v114 = vshrl.u32 %v113, 7
    %v115 = vsub.s32 2, %v114
    %v116 = vrot.slane %v53, %v115
    %v117 = vmul.f32 %v108, %v112
    %v118 = vmul.f32 %v107, %v116
    %119 = vst [vmem:[#allocation2 + $0x40] sm:$0xff] %v117
    %120 = vst [vmem:[#allocation2 + $0x48] sm:$0xff] %v118
    %121 = vrot.lane.b32.xlu0 %v60, 1
    %v122 = vpop.permute.xlu0 %121
    %123 = vrot.lane.b32.xlu0 %v61, 1
    %v124 = vpop.permute.xlu0 %123
    %vm125 = vcmp.lt.s32.totalorder %v67, 1
    %v126 = vsel %vm125, %v122, %v124
    %v127 = vsel %vm125, %v124, %v122
    %v128 = vlaneseq
    %v129 = vshrl.u32 %v128, 7
    %v130 = vsub.s32 3, %v129
    %v131 = vrot.slane %v52, %v130
    %v132 = vlaneseq
    %v133 = vshrl.u32 %v132, 7
    %v134 = vsub.s32 3, %v133
    %v135 = vrot.slane %v53, %v134
    %v136 = vmul.f32 %v127, %v131
    %v137 = vmul.f32 %v126, %v135
    %138 = vst [vmem:[#allocation2 + $0x60] sm:$0xff] %v136
    %139 = vst [vmem:[#allocation2 + $0x68] sm:$0xff] %v137
    %140 = vst [vmem:[#allocation2 + $0x80] sm:$0xff] %v60
    %141 = vst [vmem:[#allocation2 + $0x88] sm:$0xff] %v61
    %142 = vrot.lane.b32.xlu0 %v60, 127
    %v143 = vpop.permute.xlu0 %142
    %144 = vrot.lane.b32.xlu0 %v61, 127
    %v145 = vpop.permute.xlu0 %144
    %vm146 = vcmp.lt.s32.totalorder %v67, 127
    %v147 = vsel %vm146, %v143, %v145
    %v148 = vsel %vm146, %v145, %v143
    %v149 = vlaneseq
    %v150 = vshrl.u32 %v149, 7
    %v151 = vsub.s32 5, %v150
    %v152 = vrot.slane %v52, %v151
    %v153 = vlaneseq
    %v154 = vshrl.u32 %v153, 7
    %v155 = vsub.s32 5, %v154
    %v156 = vrot.slane %v53, %v155
    %v157 = vmul.f32 %v147, %v152
    %v158 = vmul.f32 %v148, %v156
    %159 = vst [vmem:[#allocation2 + $0xa0] sm:$0xff] %v157
    %160 = vst [vmem:[#allocation2 + $0xa8] sm:$0xff] %v158
    %161 = vrot.lane.b32.xlu0 %v60, 113
    %v162 = vpop.permute.xlu0 %161
    %163 = vrot.lane.b32.xlu0 %v61, 113
    %v164 = vpop.permute.xlu0 %163
    %vm165 = vcmp.lt.s32.totalorder %v67, 113
    %v166 = vsel %vm165, %v162, %v164
    %v167 = vsel %vm165, %v164, %v162
    %v168 = vlaneseq
    %v169 = vshrl.u32 %v168, 7
    %v170 = vsub.s32 6, %v169
    %v171 = vrot.slane %v52, %v170
    %v172 = vlaneseq
    %v173 = vshrl.u32 %v172, 7
    %v174 = vsub.s32 6, %v173
    %v175 = vrot.slane %v53, %v174
    %v176 = vmul.f32 %v166, %v171
    %v177 = vmul.f32 %v167, %v175
    %178 = vst [vmem:[#allocation2 + $0xc0] sm:$0xff] %v176
    %179 = vst [vmem:[#allocation2 + $0xc8] sm:$0xff] %v177
    %180 = vrot.lane.b32.xlu0 %v60, 112
    %v181 = vpop.permute.xlu0 %180
    %182 = vrot.lane.b32.xlu0 %v61, 112
    %v183 = vpop.permute.xlu0 %182
    %vm184 = vcmp.lt.s32.totalorder %v67, 112
    %v185 = vsel %vm184, %v181, %v183
    %v186 = vsel %vm184, %v183, %v181
    %v187 = vlaneseq
    %v188 = vshrl.u32 %v187, 7
    %v189 = vsub.s32 7, %v188
    %v190 = vrot.slane %v52, %v189
    %v191 = vlaneseq
    %v192 = vshrl.u32 %v191, 7
    %v193 = vsub.s32 7, %v192
    %v194 = vrot.slane %v53, %v193
    %v195 = vmul.f32 %v185, %v190
    %v196 = vmul.f32 %v186, %v194
    %197 = vst [vmem:[#allocation2 + $0xe0] sm:$0xff] %v195
    %198 = vst [vmem:[#allocation2 + $0xe8] sm:$0xff] %v196
    %199 = vrot.lane.b32.xlu0 %v60, 111
    %v200 = vpop.permute.xlu0 %199
    %201 = vrot.lane.b32.xlu0 %v61, 111
    %v202 = vpop.permute.xlu0 %201
    %vm203 = vcmp.lt.s32.totalorder %v67, 111
    %v204 = vsel %vm203, %v200, %v202
    %v205 = vsel %vm203, %v202, %v200
    %v206 = vlaneseq
    %v207 = vshrl.u32 %v206, 7
    %v208 = vsub.s32 0, %v207
    %v209 = vrot.slane %v56, %v208
    %v210 = vlaneseq
    %v211 = vshrl.u32 %v210, 7
    %v212 = vsub.s32 0, %v211
    %v213 = vrot.slane %v57, %v212
    %v214 = vmul.f32 %v204, %v209
    %v215 = vmul.f32 %v205, %v213
    %216 = vst [vmem:[#allocation2 + $0x100] sm:$0xff] %v214
    %217 = vst [vmem:[#allocation2 + $0x108] sm:$0xff] %v215
    %s218 = scalar_lea.vmem [#allocation4], 16
    %v219 = vld [vmem:[%s218] sm:$0xff]
    %v220 = vld [vmem:[%s218 + $0x8] sm:$0xff]
    %221 = vrot.lane.b32.xlu0 %v219, 17
    %v222 = vpop.permute.xlu0 %221
    %223 = vrot.lane.b32.xlu0 %v220, 17
    %v224 = vpop.permute.xlu0 %223
    %v225 = vsel %vm68, %v222, %v224
    %v226 = vsel %vm68, %v224, %v222
    %v227 = vmul.f32 %v226, %v74
    %v228 = vmul.f32 %v225, %v78
    %229 = vst [vmem:[#allocation2 + $0x10] sm:$0xff] %v227
    %230 = vst [vmem:[#allocation2 + $0x18] sm:$0xff] %v228
    %231 = vrot.lane.b32.xlu0 %v219, 16
    %v232 = vpop.permute.xlu0 %231
    %233 = vrot.lane.b32.xlu0 %v220, 16
    %v234 = vpop.permute.xlu0 %233
    %v235 = vsel %vm87, %v232, %v234
    %v236 = vsel %vm87, %v234, %v232
    %v237 = vmul.f32 %v236, %v93
    %v238 = vmul.f32 %v235, %v97
    %239 = vst [vmem:[#allocation2 + $0x30] sm:$0xff] %v237
    %240 = vst [vmem:[#allocation2 + $0x38] sm:$0xff] %v238
    %241 = vrot.lane.b32.xlu0 %v219, 15
    %v242 = vpop.permute.xlu0 %241
    %243 = vrot.lane.b32.xlu0 %v220, 15
    %v244 = vpop.permute.xlu0 %243
    %v245 = vsel %vm106, %v242, %v244
    %v246 = vsel %vm106, %v244, %v242
    %v247 = vmul.f32 %v246, %v112
    %v248 = vmul.f32 %v245, %v116
    %249 = vst [vmem:[#allocation2 + $0x50] sm:$0xff] %v247
    %250 = vst [vmem:[#allocation2 + $0x58] sm:$0xff] %v248
    %251 = vrot.lane.b32.xlu0 %v219, 1
    %v252 = vpop.permute.xlu0 %251
    %253 = vrot.lane.b32.xlu0 %v220, 1
    %v254 = vpop.permute.xlu0 %253
    %v255 = vsel %vm125, %v252, %v254
    %v256 = vsel %vm125, %v254, %v252
    %v257 = vmul.f32 %v256, %v131
    %v258 = vmul.f32 %v255, %v135
    %259 = vst [vmem:[#allocation2 + $0x70] sm:$0xff] %v257
    %260 = vst [vmem:[#allocation2 + $0x78] sm:$0xff] %v258
    %261 = vst [vmem:[#allocation2 + $0x90] sm:$0xff] %v219
    %262 = vst [vmem:[#allocation2 + $0x98] sm:$0xff] %v220
    %263 = vrot.lane.b32.xlu0 %v219, 127
    %v264 = vpop.permute.xlu0 %263
    %265 = vrot.lane.b32.xlu0 %v220, 127
    %v266 = vpop.permute.xlu0 %265
    %v267 = vsel %vm146, %v264, %v266
    %v268 = vsel %vm146, %v266, %v264
    %v269 = vmul.f32 %v267, %v152
    %v270 = vmul.f32 %v268, %v156
    %271 = vst [vmem:[#allocation2 + $0xb0] sm:$0xff] %v269
    %272 = vst [vmem:[#allocation2 + $0xb8] sm:$0xff] %v270
    %273 = vrot.lane.b32.xlu0 %v219, 113
    %v274 = vpop.permute.xlu0 %273
    %275 = vrot.lane.b32.xlu0 %v220, 113
    %v276 = vpop.permute.xlu0 %275
    %v277 = vsel %vm165, %v274, %v276
    %v278 = vsel %vm165, %v276, %v274
    %v279 = vmul.f32 %v277, %v171
    %v280 = vmul.f32 %v278, %v175
    %281 = vst [vmem:[#allocation2 + $0xd0] sm:$0xff] %v279
    %282 = vst [vmem:[#allocation2 + $0xd8] sm:$0xff] %v280
    %283 = vrot.lane.b32.xlu0 %v219, 112
    %v284 = vpop.permute.xlu0 %283
    %285 = vrot.lane.b32.xlu0 %v220, 112
    %v286 = vpop.permute.xlu0 %285
    %v287 = vsel %vm184, %v284, %v286
    %v288 = vsel %vm184, %v286, %v284
    %v289 = vmul.f32 %v287, %v190
    %v290 = vmul.f32 %v288, %v194
    %291 = vst [vmem:[#allocation2 + $0xf0] sm:$0xff] %v289
    %292 = vst [vmem:[#allocation2 + $0xf8] sm:$0xff] %v290
    %293 = vrot.lane.b32.xlu0 %v219, 111
    %v294 = vpop.permute.xlu0 %293
    %295 = vrot.lane.b32.xlu0 %v220, 111
    %v296 = vpop.permute.xlu0 %295
    %v297 = vsel %vm203, %v294, %v296
    %v298 = vsel %vm203, %v296, %v294
    %v299 = vmul.f32 %v297, %v209
    %v300 = vmul.f32 %v298, %v213
    %301 = vst [vmem:[#allocation2 + $0x110] sm:$0xff] %v299
    %302 = vst [vmem:[#allocation2 + $0x118] sm:$0xff] %v300
    %v303 = vld [vmem:[%s2] sm:$0xff]
    %v304 = vld [vmem:[#allocation2] sm:$0xff]
    %v305 = vld [vmem:[#allocation2 + $0x8] sm:$0xff]
    %v306 = vld [vmem:[#allocation2 + $0x10] sm:$0xff]
    %v307 = vld [vmem:[#allocation2 + $0x18] sm:$0xff]
    %v308 = vld [vmem:[#allocation2 + $0x20] sm:$0xff]
    %v309 = vld [vmem:[#allocation2 + $0x28] sm:$0xff]
    %v310 = vld [vmem:[#allocation2 + $0x30] sm:$0xff]
    %v311 = vld [vmem:[#allocation2 + $0x38] sm:$0xff]
    %v312 = vld [vmem:[#allocation2 + $0x40] sm:$0xff]
    %v313 = vld [vmem:[#allocation2 + $0x48] sm:$0xff]
    %v314 = vld [vmem:[#allocation2 + $0x50] sm:$0xff]
    %v315 = vld [vmem:[#allocation2 + $0x58] sm:$0xff]
    %v316 = vld [vmem:[#allocation2 + $0x60] sm:$0xff]
    %v317 = vld [vmem:[#allocation2 + $0x68] sm:$0xff]
    %v318 = vld [vmem:[#allocation2 + $0x70] sm:$0xff]
    %v319 = vld [vmem:[#allocation2 + $0x78] sm:$0xff]
    %v320 = vld [vmem:[#allocation2 + $0x80] sm:$0xff]
    %v321 = vld [vmem:[#allocation2 + $0x88] sm:$0xff]
    %v322 = vld [vmem:[#allocation2 + $0x90] sm:$0xff]
    %v323 = vld [vmem:[#allocation2 + $0x98] sm:$0xff]
    %v324 = vld [vmem:[#allocation2 + $0xa0] sm:$0xff]
    %v325 = vld [vmem:[#allocation2 + $0xa8] sm:$0xff]
    %v326 = vld [vmem:[#allocation2 + $0xb0] sm:$0xff]
    %v327 = vld [vmem:[#allocation2 + $0xb8] sm:$0xff]
    %v328 = vld [vmem:[#allocation2 + $0xc0] sm:$0xff]
    %v329 = vld [vmem:[#allocation2 + $0xc8] sm:$0xff]
    %v330 = vld [vmem:[#allocation2 + $0xd0] sm:$0xff]
    %v331 = vld [vmem:[#allocation2 + $0xd8] sm:$0xff]
    %v332 = vld [vmem:[#allocation2 + $0xe0] sm:$0xff]
    %v333 = vld [vmem:[#allocation2 + $0xe8] sm:$0xff]
    %v334 = vld [vmem:[#allocation2 + $0xf0] sm:$0xff]
    %v335 = vld [vmem:[#allocation2 + $0xf8] sm:$0xff]
    %v336 = vld [vmem:[#allocation2 + $0x100] sm:$0xff]
    %v337 = vld [vmem:[#allocation2 + $0x108] sm:$0xff]
    %v338 = vld [vmem:[#allocation2 + $0x110] sm:$0xff]
    %v339 = vld [vmem:[#allocation2 + $0x118] sm:$0xff]
    %v340 = vld [vmem:[%s3] sm:$0xff]
    %342 = vset.pattern.permute.xlu0 0
    %343 = vperm.xlu0 %342, %v340
    %v344 = vpop.permute.xlu0 %343
    %vm346 = vcmask 588800
    %v348 = vsel %vm346, %v303, 0
    %350 = vmatprep.subr.mxu0 0.0
    %351 = vmatpush1.msra.mxu0 0.0
    %352 = vmatprep.subr.mxu0 0.0
    %353 = vmatpush1.msra.mxu0 0.0
    %354 = vmatprep.subr.mxu0 0.0
    %355 = vmatpush1.msra.mxu0 0.0
    %356 = vmatprep.subr.mxu0 0.0
    %357 = vmatpush1.msra.mxu0 0.0
    %358 = vmatprep.subr.mxu0 0.0
    %359 = vmatpush1.msra.mxu0 0.0
    %360 = vmatprep.subr.mxu0 0.0
    %361 = vmatpush1.msra.mxu0 0.0
    %362 = vmatprep.subr.mxu0 0.0
    %363 = vmatpush1.msra.mxu0 0.0
    %364 = vmatprep.subr.mxu0 %v337
    %365 = vmatpush1.msra.mxu0 %v336
    %366 = vmatprep.subr.mxu0 %v333
    %367 = vmatpush1.msra.mxu0 %v332
    %368 = vmatprep.subr.mxu0 %v329
    %369 = vmatpush1.msra.mxu0 %v328
    %370 = vmatprep.subr.mxu0 %v325
    %371 = vmatpush1.msra.mxu0 %v324
    %372 = vmatprep.subr.mxu0 %v321
    %373 = vmatpush1.msra.mxu0 %v320
    %374 = vmatprep.subr.mxu0 %v317
    %375 = vmatpush1.msra.mxu0 %v316
    %376 = vmatprep.subr.mxu0 %v313
    %377 = vmatpush1.msra.mxu0 %v312
    %378 = vmatprep.subr.mxu0 %v309
    %379 = vmatpush1.msra.mxu0 %v308
    %380 = vmatprep.subr.mxu0 %v305
    %381 = vmatpush1.msra.mxu0 %v304
    %382 = vmatprep.subr.mxu0 0.0
    %383 = vmatpush2.msra.mxu0 0.0
    %384 = vmatprep.subr.mxu0 0.0
    %385 = vmatpush2.msra.mxu0 0.0
    %386 = vmatprep.subr.mxu0 0.0
    %387 = vmatpush2.msra.mxu0 0.0
    %388 = vmatprep.subr.mxu0 0.0
    %389 = vmatpush2.msra.mxu0 0.0
    %390 = vmatprep.subr.mxu0 0.0
    %391 = vmatpush2.msra.mxu0 0.0
    %392 = vmatprep.subr.mxu0 0.0
    %393 = vmatpush2.msra.mxu0 0.0
    %394 = vmatprep.subr.mxu0 0.0
    %395 = vmatpush2.msra.mxu0 0.0
    %396 = vmatprep.subr.mxu0 0.0
    %397 = vmatpush2.msra.mxu0 0.0
    %398 = vmatprep.subr.mxu0 0.0
    %399 = vmatpush2.msra.mxu0 0.0
    %400 = vmatprep.subr.mxu0 0.0
    %401 = vmatpush2.msra.mxu0 0.0
    %402 = vmatprep.subr.mxu0 0.0
    %403 = vmatpush2.msra.mxu0 0.0
    %404 = vmatprep.subr.mxu0 0.0
    %405 = vmatpush2.msra.mxu0 0.0
    %406 = vmatprep.subr.mxu0 0.0
    %407 = vmatpush2.msra.mxu0 0.0
    %408 = vmatprep.subr.mxu0 0.0
    %409 = vmatpush2.msra.mxu0 0.0
    %410 = vmatprep.subr.mxu0 0.0
    %411 = vmatpush2.msra.mxu0 0.0
    %412 = vmatprep.subr.mxu0 0.0
    %413 = vmatpush2.msra.mxu0 0.0
    %414 = vmatprep.mubr.f32.mxu0 0.0
    %415 = vmatmul.mubr.f32.gmra.mxu0 %v348
    %v416 = vpop.f32.mrf.mxu0
    %v417 = vadd.f32 %v344, %v416
    %v418 = vpop.f32.mrf.mxu0
    %v419 = vadd.f32 %v344, %v418
    %420 = vdwg.mxu0
    %421 = vmatprep.subr.mxu0 0.0
    %422 = vmatpush1.msra.mxu0 0.0
    %423 = vmatprep.subr.mxu0 0.0
    %424 = vmatpush1.msra.mxu0 0.0
    %425 = vmatprep.subr.mxu0 0.0
    %426 = vmatpush1.msra.mxu0 0.0
    %427 = vmatprep.subr.mxu0 0.0
    %428 = vmatpush1.msra.mxu0 0.0
    %429 = vmatprep.subr.mxu0 0.0
    %430 = vmatpush1.msra.mxu0 0.0
    %431 = vmatprep.subr.mxu0 0.0
    %432 = vmatpush1.msra.mxu0 0.0
    %433 = vmatprep.subr.mxu0 0.0
    %434 = vmatpush1.msra.mxu0 0.0
    %435 = vmatprep.subr.mxu0 %v339
    %436 = vmatpush1.msra.mxu0 %v338
    %437 = vmatprep.subr.mxu0 %v335
    %438 = vmatpush1.msra.mxu0 %v334
    %439 = vmatprep.subr.mxu0 %v331
    %440 = vmatpush1.msra.mxu0 %v330
    %441 = vmatprep.subr.mxu0 %v327
    %442 = vmatpush1.msra.mxu0 %v326
    %443 = vmatprep.subr.mxu0 %v323
    %444 = vmatpush1.msra.mxu0 %v322
    %445 = vmatprep.subr.mxu0 %v319
    %446 = vmatpush1.msra.mxu0 %v318
    %447 = vmatprep.subr.mxu0 %v315
    %448 = vmatpush1.msra.mxu0 %v314
    %449 = vmatprep.subr.mxu0 %v311
    %450 = vmatpush1.msra.mxu0 %v310
    %451 = vmatprep.subr.mxu0 %v307
    %452 = vmatpush1.msra.mxu0 %v306
    %453 = vmatprep.subr.mxu0 0.0
    %454 = vmatpush2.msra.mxu0 0.0
    %455 = vmatprep.subr.mxu0 0.0
    %456 = vmatpush2.msra.mxu0 0.0
    %457 = vmatprep.subr.mxu0 0.0
    %458 = vmatpush2.msra.mxu0 0.0
    %459 = vmatprep.subr.mxu0 0.0
    %460 = vmatpush2.msra.mxu0 0.0
    %461 = vmatprep.subr.mxu0 0.0
    %462 = vmatpush2.msra.mxu0 0.0
    %463 = vmatprep.subr.mxu0 0.0
    %464 = vmatpush2.msra.mxu0 0.0
    %465 = vmatprep.subr.mxu0 0.0
    %466 = vmatpush2.msra.mxu0 0.0
    %467 = vmatprep.subr.mxu0 0.0
    %468 = vmatpush2.msra.mxu0 0.0
    %469 = vmatprep.subr.mxu0 0.0
    %470 = vmatpush2.msra.mxu0 0.0
    %471 = vmatprep.subr.mxu0 0.0
    %472 = vmatpush2.msra.mxu0 0.0
    %473 = vmatprep.subr.mxu0 0.0
    %474 = vmatpush2.msra.mxu0 0.0
    %475 = vmatprep.subr.mxu0 0.0
    %476 = vmatpush2.msra.mxu0 0.0
    %477 = vmatprep.subr.mxu0 0.0
    %478 = vmatpush2.msra.mxu0 0.0
    %479 = vmatprep.subr.mxu0 0.0
    %480 = vmatpush2.msra.mxu0 0.0
    %481 = vmatprep.subr.mxu0 0.0
    %482 = vmatpush2.msra.mxu0 0.0
    %483 = vmatprep.subr.mxu0 0.0
    %484 = vmatpush2.msra.mxu0 0.0
    %485 = vmatprep.mubr.f32.mxu0 0.0
    %486 = vmatmul.mubr.f32.gmra.mxu0 %v348
    %v487 = vpop.f32.mrf.mxu0
    %v488 = vadd.f32 %v344, %v487
    %v489 = vpop.f32.mrf.mxu0
    %v490 = vadd.f32 %v344, %v489
    %491 = vdwg.mxu0
    %v492 = vmax.f32 %v417, 0.0
    %v493 = vmax.f32 %v419, 0.0
    %v494 = vmax.f32 %v488, 0.0
    %v495 = vmax.f32 %v490, 0.0
    %496 = vrot.lane.b32.xlu0 %v492, 17
    %v497 = vpop.permute.xlu0 %496
    %498 = vrot.lane.b32.xlu0 %v493, 17
    %v499 = vpop.permute.xlu0 %498
    %500 = vrot.lane.b32.xlu0 %v494, 17
    %v501 = vpop.permute.xlu0 %500
    %502 = vrot.lane.b32.xlu0 %v495, 17
    %v503 = vpop.permute.xlu0 %502
    %v504 = vsel %vm68, %v501, %v503
    %v505 = vsel %vm68, %v499, %v501
    %v506 = vsel %vm68, %v497, %v499
    %v507 = vsel %vm68, %v503, %v497
    %v508 = vlaneseq
    %v509 = vshrl.u32 %v508, 7
    %v510 = vsub.s32 0, %v509
    %v511 = vrot.slane %v54, %v510
    %v512 = vlaneseq
    %v513 = vshrl.u32 %v512, 7
    %v514 = vsub.s32 0, %v513
    %v515 = vrot.slane %v55, %v514
    %v516 = vmul.f32 %v507, %v74
    %v517 = vmul.f32 %v506, %v78
    %v518 = vmul.f32 %v505, %v511
    %v519 = vmul.f32 %v504, %v515
    %520 = vst [vmem:[#allocation3] sm:$0xff] %v516
    %521 = vst [vmem:[#allocation3 + $0x8] sm:$0xff] %v517
    %522 = vst [vmem:[#allocation3 + $0x10] sm:$0xff] %v518
    %523 = vst [vmem:[#allocation3 + $0x18] sm:$0xff] %v519
    %524 = vrot.lane.b32.xlu0 %v492, 16
    %v525 = vpop.permute.xlu0 %524
    %526 = vrot.lane.b32.xlu0 %v493, 16
    %v527 = vpop.permute.xlu0 %526
    %528 = vrot.lane.b32.xlu0 %v494, 16
    %v529 = vpop.permute.xlu0 %528
    %530 = vrot.lane.b32.xlu0 %v495, 16
    %v531 = vpop.permute.xlu0 %530
    %v532 = vsel %vm87, %v529, %v531
    %v533 = vsel %vm87, %v527, %v529
    %v534 = vsel %vm87, %v525, %v527
    %v535 = vsel %vm87, %v531, %v525
    %v536 = vlaneseq
    %v537 = vshrl.u32 %v536, 7
    %v538 = vsub.s32 1, %v537
    %v539 = vrot.slane %v54, %v538
    %v540 = vlaneseq
    %v541 = vshrl.u32 %v540, 7
    %v542 = vsub.s32 1, %v541
    %v543 = vrot.slane %v55, %v542
    %v544 = vmul.f32 %v535, %v93
    %v545 = vmul.f32 %v534, %v97
    %v546 = vmul.f32 %v533, %v539
    %v547 = vmul.f32 %v532, %v543
    %548 = vst [vmem:[#allocation3 + $0x20] sm:$0xff] %v544
    %549 = vst [vmem:[#allocation3 + $0x28] sm:$0xff] %v545
    %550 = vst [vmem:[#allocation3 + $0x30] sm:$0xff] %v546
    %551 = vst [vmem:[#allocation3 + $0x38] sm:$0xff] %v547
    %552 = vrot.lane.b32.xlu0 %v492, 15
    %v553 = vpop.permute.xlu0 %552
    %554 = vrot.lane.b32.xlu0 %v493, 15
    %v555 = vpop.permute.xlu0 %554
    %556 = vrot.lane.b32.xlu0 %v494, 15
    %v557 = vpop.permute.xlu0 %556
    %558 = vrot.lane.b32.xlu0 %v495, 15
    %v559 = vpop.permute.xlu0 %558
    %v560 = vsel %vm106, %v557, %v559
    %v561 = vsel %vm106, %v555, %v557
    %v562 = vsel %vm106, %v553, %v555
    %v563 = vsel %vm106, %v559, %v553
    %v564 = vlaneseq
    %v565 = vshrl.u32 %v564, 7
    %v566 = vsub.s32 2, %v565
    %v567 = vrot.slane %v54, %v566
    %v568 = vlaneseq
    %v569 = vshrl.u32 %v568, 7
    %v570 = vsub.s32 2, %v569
    %v571 = vrot.slane %v55, %v570
    %v572 = vmul.f32 %v563, %v112
    %v573 = vmul.f32 %v562, %v116
    %v574 = vmul.f32 %v561, %v567
    %v575 = vmul.f32 %v560, %v571
    %576 = vst [vmem:[#allocation3 + $0x40] sm:$0xff] %v572
    %577 = vst [vmem:[#allocation3 + $0x48] sm:$0xff] %v573
    %578 = vst [vmem:[#allocation3 + $0x50] sm:$0xff] %v574
    %579 = vst [vmem:[#allocation3 + $0x58] sm:$0xff] %v575
    %580 = vrot.lane.b32.xlu0 %v492, 1
    %v581 = vpop.permute.xlu0 %580
    %582 = vrot.lane.b32.xlu0 %v493, 1
    %v583 = vpop.permute.xlu0 %582
    %584 = vrot.lane.b32.xlu0 %v494, 1
    %v585 = vpop.permute.xlu0 %584
    %586 = vrot.lane.b32.xlu0 %v495, 1
    %v587 = vpop.permute.xlu0 %586
    %v588 = vsel %vm125, %v585, %v587
    %v589 = vsel %vm125, %v583, %v585
    %v590 = vsel %vm125, %v581, %v583
    %v591 = vsel %vm125, %v587, %v581
    %v592 = vlaneseq
    %v593 = vshrl.u32 %v592, 7
    %v594 = vsub.s32 3, %v593
    %v595 = vrot.slane %v54, %v594
    %v596 = vlaneseq
    %v597 = vshrl.u32 %v596, 7
    %v598 = vsub.s32 3, %v597
    %v599 = vrot.slane %v55, %v598
    %v600 = vmul.f32 %v591, %v131
    %v601 = vmul.f32 %v590, %v135
    %v602 = vmul.f32 %v589, %v595
    %v603 = vmul.f32 %v588, %v599
    %604 = vst [vmem:[#allocation3 + $0x60] sm:$0xff] %v600
    %605 = vst [vmem:[#allocation3 + $0x68] sm:$0xff] %v601
    %606 = vst [vmem:[#allocation3 + $0x70] sm:$0xff] %v602
    %607 = vst [vmem:[#allocation3 + $0x78] sm:$0xff] %v603
    %608 = vst [vmem:[#allocation3 + $0x80] sm:$0xff] %v492
    %609 = vst [vmem:[#allocation3 + $0x88] sm:$0xff] %v493
    %610 = vst [vmem:[#allocation3 + $0x90] sm:$0xff] %v494
    %611 = vst [vmem:[#allocation3 + $0x98] sm:$0xff] %v495
    %612 = vrot.lane.b32.xlu0 %v492, 127
    %v613 = vpop.permute.xlu0 %612
    %614 = vrot.lane.b32.xlu0 %v493, 127
    %v615 = vpop.permute.xlu0 %614
    %616 = vrot.lane.b32.xlu0 %v494, 127
    %v617 = vpop.permute.xlu0 %616
    %618 = vrot.lane.b32.xlu0 %v495, 127
    %v619 = vpop.permute.xlu0 %618
    %v620 = vsel %vm146, %v617, %v619
    %v621 = vsel %vm146, %v615, %v617
    %v622 = vsel %vm146, %v613, %v615
    %v623 = vsel %vm146, %v619, %v613
    %v624 = vlaneseq
    %v625 = vshrl.u32 %v624, 7
    %v626 = vsub.s32 5, %v625
    %v627 = vrot.slane %v54, %v626
    %v628 = vlaneseq
    %v629 = vshrl.u32 %v628, 7
    %v630 = vsub.s32 5, %v629
    %v631 = vrot.slane %v55, %v630
    %v632 = vmul.f32 %v622, %v152
    %v633 = vmul.f32 %v621, %v156
    %v634 = vmul.f32 %v620, %v627
    %v635 = vmul.f32 %v623, %v631
    %636 = vst [vmem:[#allocation3 + $0xa0] sm:$0xff] %v632
    %637 = vst [vmem:[#allocation3 + $0xa8] sm:$0xff] %v633
    %638 = vst [vmem:[#allocation3 + $0xb0] sm:$0xff] %v634
    %639 = vst [vmem:[#allocation3 + $0xb8] sm:$0xff] %v635
    %640 = vrot.lane.b32.xlu0 %v492, 113
    %v641 = vpop.permute.xlu0 %640
    %642 = vrot.lane.b32.xlu0 %v493, 113
    %v643 = vpop.permute.xlu0 %642
    %644 = vrot.lane.b32.xlu0 %v494, 113
    %v645 = vpop.permute.xlu0 %644
    %646 = vrot.lane.b32.xlu0 %v495, 113
    %v647 = vpop.permute.xlu0 %646
    %v648 = vsel %vm165, %v645, %v647
    %v649 = vsel %vm165, %v643, %v645
    %v650 = vsel %vm165, %v641, %v643
    %v651 = vsel %vm165, %v647, %v641
    %v652 = vlaneseq
    %v653 = vshrl.u32 %v652, 7
    %v654 = vsub.s32 6, %v653
    %v655 = vrot.slane %v54, %v654
    %v656 = vlaneseq
    %v657 = vshrl.u32 %v656, 7
    %v658 = vsub.s32 6, %v657
    %v659 = vrot.slane %v55, %v658
    %v660 = vmul.f32 %v650, %v171
    %v661 = vmul.f32 %v649, %v175
    %v662 = vmul.f32 %v648, %v655
    %v663 = vmul.f32 %v651, %v659
    %664 = vst [vmem:[#allocation3 + $0xc0] sm:$0xff] %v660
    %665 = vst [vmem:[#allocation3 + $0xc8] sm:$0xff] %v661
    %666 = vst [vmem:[#allocation3 + $0xd0] sm:$0xff] %v662
    %667 = vst [vmem:[#allocation3 + $0xd8] sm:$0xff] %v663
    %668 = vrot.lane.b32.xlu0 %v492, 112
    %v669 = vpop.permute.xlu0 %668
    %670 = vrot.lane.b32.xlu0 %v493, 112
    %v671 = vpop.permute.xlu0 %670
    %672 = vrot.lane.b32.xlu0 %v494, 112
    %v673 = vpop.permute.xlu0 %672
    %674 = vrot.lane.b32.xlu0 %v495, 112
    %v675 = vpop.permute.xlu0 %674
    %v676 = vsel %vm184, %v673, %v675
    %v677 = vsel %vm184, %v671, %v673
    %v678 = vsel %vm184, %v669, %v671
    %v679 = vsel %vm184, %v675, %v669
    %v680 = vlaneseq
    %v681 = vshrl.u32 %v680, 7
    %v682 = vsub.s32 7, %v681
    %v683 = vrot.slane %v54, %v682
    %v684 = vlaneseq
    %v685 = vshrl.u32 %v684, 7
    %v686 = vsub.s32 7, %v685
    %v687 = vrot.slane %v55, %v686
    %v688 = vmul.f32 %v678, %v190
    %v689 = vmul.f32 %v677, %v194
    %v690 = vmul.f32 %v676, %v683
    %v691 = vmul.f32 %v679, %v687
    %692 = vst [vmem:[#allocation3 + $0xe0] sm:$0xff] %v688
    %693 = vst [vmem:[#allocation3 + $0xe8] sm:$0xff] %v689
    %694 = vst [vmem:[#allocation3 + $0xf0] sm:$0xff] %v690
    %695 = vst [vmem:[#allocation3 + $0xf8] sm:$0xff] %v691
    %696 = vrot.lane.b32.xlu0 %v492, 111
    %v697 = vpop.permute.xlu0 %696
    %698 = vrot.lane.b32.xlu0 %v493, 111
    %v699 = vpop.permute.xlu0 %698
    %700 = vrot.lane.b32.xlu0 %v494, 111
    %v701 = vpop.permute.xlu0 %700
    %702 = vrot.lane.b32.xlu0 %v495, 111
    %v703 = vpop.permute.xlu0 %702
    %v704 = vsel %vm203, %v701, %v703
    %v705 = vsel %vm203, %v699, %v701
    %v706 = vsel %vm203, %v697, %v699
    %v707 = vsel %vm203, %v703, %v697
    %v708 = vlaneseq
    %v709 = vshrl.u32 %v708, 7
    %v710 = vsub.s32 0, %v709
    %v711 = vrot.slane %v58, %v710
    %v712 = vlaneseq
    %v713 = vshrl.u32 %v712, 7
    %v714 = vsub.s32 0, %v713
    %v715 = vrot.slane %v59, %v714
    %v716 = vmul.f32 %v706, %v209
    %v717 = vmul.f32 %v705, %v213
    %v718 = vmul.f32 %v704, %v711
    %v719 = vmul.f32 %v707, %v715
    %720 = vst [vmem:[#allocation3 + $0x100] sm:$0xff] %v716
    %721 = vst [vmem:[#allocation3 + $0x108] sm:$0xff] %v717
    %722 = vst [vmem:[#allocation3 + $0x110] sm:$0xff] %v718
    %723 = vst [vmem:[#allocation3 + $0x118] sm:$0xff] %v719
    %v724 = vld [vmem:[%s4] sm:$0xff]
    %v725 = vld [vmem:[#allocation3] sm:$0xff]
    %v726 = vld [vmem:[#allocation3 + $0x8] sm:$0xff]
    %v727 = vld [vmem:[#allocation3 + $0x10] sm:$0xff]
    %v728 = vld [vmem:[#allocation3 + $0x18] sm:$0xff]
    %v729 = vld [vmem:[#allocation3 + $0x20] sm:$0xff]
    %v730 = vld [vmem:[#allocation3 + $0x28] sm:$0xff]
    %v731 = vld [vmem:[#allocation3 + $0x30] sm:$0xff]
    %v732 = vld [vmem:[#allocation3 + $0x38] sm:$0xff]
    %v733 = vld [vmem:[#allocation3 + $0x40] sm:$0xff]
    %v734 = vld [vmem:[#allocation3 + $0x48] sm:$0xff]
    %v735 = vld [vmem:[#allocation3 + $0x50] sm:$0xff]
    %v736 = vld [vmem:[#allocation3 + $0x58] sm:$0xff]
    %v737 = vld [vmem:[#allocation3 + $0x60] sm:$0xff]
    %v738 = vld [vmem:[#allocation3 + $0x68] sm:$0xff]
    %v739 = vld [vmem:[#allocation3 + $0x70] sm:$0xff]
    %v740 = vld [vmem:[#allocation3 + $0x78] sm:$0xff]
    %v741 = vld [vmem:[#allocation3 + $0x80] sm:$0xff]
    %v742 = vld [vmem:[#allocation3 + $0x88] sm:$0xff]
    %v743 = vld [vmem:[#allocation3 + $0x90] sm:$0xff]
    %v744 = vld [vmem:[#allocation3 + $0x98] sm:$0xff]
    %v745 = vld [vmem:[#allocation3 + $0xa0] sm:$0xff]
    %v746 = vld [vmem:[#allocation3 + $0xa8] sm:$0xff]
    %v747 = vld [vmem:[#allocation3 + $0xb0] sm:$0xff]
    %v748 = vld [vmem:[#allocation3 + $0xb8] sm:$0xff]
    %v749 = vld [vmem:[#allocation3 + $0xc0] sm:$0xff]
    %v750 = vld [vmem:[#allocation3 + $0xc8] sm:$0xff]
    %v751 = vld [vmem:[#allocation3 + $0xd0] sm:$0xff]
    %v752 = vld [vmem:[#allocation3 + $0xd8] sm:$0xff]
    %v753 = vld [vmem:[#allocation3 + $0xe0] sm:$0xff]
    %v754 = vld [vmem:[#allocation3 + $0xe8] sm:$0xff]
    %v755 = vld [vmem:[#allocation3 + $0xf0] sm:$0xff]
    %v756 = vld [vmem:[#allocation3 + $0xf8] sm:$0xff]
    %v757 = vld [vmem:[#allocation3 + $0x100] sm:$0xff]
    %v758 = vld [vmem:[#allocation3 + $0x108] sm:$0xff]
    %v759 = vld [vmem:[#allocation3 + $0x110] sm:$0xff]
    %v760 = vld [vmem:[#allocation3 + $0x118] sm:$0xff]
    %v761 = vld [vmem:[%s5] sm:$0xff]
    %763 = vset.pattern.permute.xlu0 0
    %764 = vperm.xlu0 %763, %v761
    %v765 = vpop.permute.xlu0 %764
    %v768 = vsel %vm346, %v724, 0
    %770 = vmatprep.subr.mxu0 0.0
    %771 = vmatpush1.msra.mxu0 0.0
    %772 = vmatprep.subr.mxu0 0.0
    %773 = vmatpush1.msra.mxu0 0.0
    %774 = vmatprep.subr.mxu0 0.0
    %775 = vmatpush1.msra.mxu0 0.0
    %776 = vmatprep.subr.mxu0 0.0
    %777 = vmatpush1.msra.mxu0 0.0
    %778 = vmatprep.subr.mxu0 0.0
    %779 = vmatpush1.msra.mxu0 0.0
    %780 = vmatprep.subr.mxu0 0.0
    %781 = vmatpush1.msra.mxu0 0.0
    %782 = vmatprep.subr.mxu0 0.0
    %783 = vmatpush1.msra.mxu0 0.0
    %784 = vmatprep.subr.mxu0 %v758
    %785 = vmatpush1.msra.mxu0 %v757
    %786 = vmatprep.subr.mxu0 %v754
    %787 = vmatpush1.msra.mxu0 %v753
    %788 = vmatprep.subr.mxu0 %v750
    %789 = vmatpush1.msra.mxu0 %v749
    %790 = vmatprep.subr.mxu0 %v746
    %791 = vmatpush1.msra.mxu0 %v745
    %792 = vmatprep.subr.mxu0 %v742
    %793 = vmatpush1.msra.mxu0 %v741
    %794 = vmatprep.subr.mxu0 %v738
    %795 = vmatpush1.msra.mxu0 %v737
    %796 = vmatprep.subr.mxu0 %v734
    %797 = vmatpush1.msra.mxu0 %v733
    %798 = vmatprep.subr.mxu0 %v730
    %799 = vmatpush1.msra.mxu0 %v729
    %800 = vmatprep.subr.mxu0 %v726
    %801 = vmatpush1.msra.mxu0 %v725
    %802 = vmatprep.subr.mxu0 0.0
    %803 = vmatpush2.msra.mxu0 0.0
    %804 = vmatprep.subr.mxu0 0.0
    %805 = vmatpush2.msra.mxu0 0.0
    %806 = vmatprep.subr.mxu0 0.0
    %807 = vmatpush2.msra.mxu0 0.0
    %808 = vmatprep.subr.mxu0 0.0
    %809 = vmatpush2.msra.mxu0 0.0
    %810 = vmatprep.subr.mxu0 0.0
    %811 = vmatpush2.msra.mxu0 0.0
    %812 = vmatprep.subr.mxu0 0.0
    %813 = vmatpush2.msra.mxu0 0.0
    %814 = vmatprep.subr.mxu0 0.0
    %815 = vmatpush2.msra.mxu0 0.0
    %816 = vmatprep.subr.mxu0 0.0
    %817 = vmatpush2.msra.mxu0 0.0
    %818 = vmatprep.subr.mxu0 0.0
    %819 = vmatpush2.msra.mxu0 0.0
    %820 = vmatprep.subr.mxu0 0.0
    %821 = vmatpush2.msra.mxu0 0.0
    %822 = vmatprep.subr.mxu0 0.0
    %823 = vmatpush2.msra.mxu0 0.0
    %824 = vmatprep.subr.mxu0 0.0
    %825 = vmatpush2.msra.mxu0 0.0
    %826 = vmatprep.subr.mxu0 0.0
    %827 = vmatpush2.msra.mxu0 0.0
    %828 = vmatprep.subr.mxu0 0.0
    %829 = vmatpush2.msra.mxu0 0.0
    %830 = vmatprep.subr.mxu0 0.0
    %831 = vmatpush2.msra.mxu0 0.0
    %832 = vmatprep.subr.mxu0 0.0
    %833 = vmatpush2.msra.mxu0 0.0
    %834 = vmatprep.mubr.f32.mxu0 0.0
    %835 = vmatmul.mubr.f32.gmra.mxu0 %v768
    %v836 = vpop.f32.mrf.mxu0
    %v837 = vadd.f32 %v765, %v836
    %v838 = vpop.f32.mrf.mxu0
    %v839 = vadd.f32 %v765, %v838
    %840 = vdwg.mxu0
    %841 = vmatprep.subr.mxu0 0.0
    %842 = vmatpush1.msra.mxu0 0.0
    %843 = vmatprep.subr.mxu0 0.0
    %844 = vmatpush1.msra.mxu0 0.0
    %845 = vmatprep.subr.mxu0 0.0
    %846 = vmatpush1.msra.mxu0 0.0
    %847 = vmatprep.subr.mxu0 0.0
    %848 = vmatpush1.msra.mxu0 0.0
    %849 = vmatprep.subr.mxu0 0.0
    %850 = vmatpush1.msra.mxu0 0.0
    %851 = vmatprep.subr.mxu0 0.0
    %852 = vmatpush1.msra.mxu0 0.0
    %853 = vmatprep.subr.mxu0 0.0
    %854 = vmatpush1.msra.mxu0 0.0
    %855 = vmatprep.subr.mxu0 %v760
    %856 = vmatpush1.msra.mxu0 %v759
    %857 = vmatprep.subr.mxu0 %v756
    %858 = vmatpush1.msra.mxu0 %v755
    %859 = vmatprep.subr.mxu0 %v752
    %860 = vmatpush1.msra.mxu0 %v751
    %861 = vmatprep.subr.mxu0 %v748
    %862 = vmatpush1.msra.mxu0 %v747
    %863 = vmatprep.subr.mxu0 %v744
    %864 = vmatpush1.msra.mxu0 %v743
    %865 = vmatprep.subr.mxu0 %v740
    %866 = vmatpush1.msra.mxu0 %v739
    %867 = vmatprep.subr.mxu0 %v736
    %868 = vmatpush1.msra.mxu0 %v735
    %869 = vmatprep.subr.mxu0 %v732
    %870 = vmatpush1.msra.mxu0 %v731
    %871 = vmatprep.subr.mxu0 %v728
    %872 = vmatpush1.msra.mxu0 %v727
    %873 = vmatprep.subr.mxu0 0.0
    %874 = vmatpush2.msra.mxu0 0.0
    %875 = vmatprep.subr.mxu0 0.0
    %876 = vmatpush2.msra.mxu0 0.0
    %877 = vmatprep.subr.mxu0 0.0
    %878 = vmatpush2.msra.mxu0 0.0
    %879 = vmatprep.subr.mxu0 0.0
    %880 = vmatpush2.msra.mxu0 0.0
    %881 = vmatprep.subr.mxu0 0.0
    %882 = vmatpush2.msra.mxu0 0.0
    %883 = vmatprep.subr.mxu0 0.0
    %884 = vmatpush2.msra.mxu0 0.0
    %885 = vmatprep.subr.mxu0 0.0
    %886 = vmatpush2.msra.mxu0 0.0
    %887 = vmatprep.subr.mxu0 0.0
    %888 = vmatpush2.msra.mxu0 0.0
    %889 = vmatprep.subr.mxu0 0.0
    %890 = vmatpush2.msra.mxu0 0.0
    %891 = vmatprep.subr.mxu0 0.0
    %892 = vmatpush2.msra.mxu0 0.0
    %893 = vmatprep.subr.mxu0 0.0
    %894 = vmatpush2.msra.mxu0 0.0
    %895 = vmatprep.subr.mxu0 0.0
    %896 = vmatpush2.msra.mxu0 0.0
    %897 = vmatprep.subr.mxu0 0.0
    %898 = vmatpush2.msra.mxu0 0.0
    %899 = vmatprep.subr.mxu0 0.0
    %900 = vmatpush2.msra.mxu0 0.0
    %901 = vmatprep.subr.mxu0 0.0
    %902 = vmatpush2.msra.mxu0 0.0
    %903 = vmatprep.subr.mxu0 0.0
    %904 = vmatpush2.msra.mxu0 0.0
    %905 = vmatprep.mubr.f32.mxu0 0.0
    %906 = vmatmul.mubr.f32.gmra.mxu0 %v768
    %v907 = vpop.f32.mrf.mxu0
    %v908 = vadd.f32 %v765, %v907
    %v909 = vpop.f32.mrf.mxu0
    %v910 = vadd.f32 %v765, %v909
    %911 = vdwg.mxu0
    %v912 = vmax.f32 %v837, 0.0
    %v913 = vmax.f32 %v839, 0.0
    %v914 = vmax.f32 %v908, 0.0
    %v915 = vmax.f32 %v910, 0.0
    %916 = vst [vmem:[#allocation9] sm:$0xff] %v912
    %917 = vst [vmem:[#allocation9 + $0x8] sm:$0xff] %v913
    %s918 = scalar_lea.vmem [#allocation9], 16
    %919 = vst [vmem:[%s918] sm:$0xff] %v914
    %920 = vst [vmem:[%s918 + $0x8] sm:$0xff] %v915
    // Predicated region
    $region34: #{tpu_custom_call.1} parent=1 // pred_check
      _
    $region35: #{tpu_custom_call.1} parent=1 // pred_check_branch
      %922 = sbr.rel (0) target = $region37
    $region36: #{tpu_custom_call.1} parent=1 // pred_region
      %s924 = ssub.s32 512, 512
      %925 = vsyncadd [#allocation6], %s924
      %s926 = sshll.u32 [#allocation9], 4
      %s927 = int_to_ptr.vmem [resolvable:$true] %s926
      %932 = dma.vmem_to_hbm [thread:$0]  %s927, 512, %s6, [#allocation6], 256, 256, 16
    $region37: #{tpu_custom_call.1} parent=1 // pred_fallthru
      _
    // Predicated region
    $region38: #{tpu_custom_call.1} parent=1 // pred_check
      _
    $region39: #{tpu_custom_call.1} parent=1 // pred_check_branch
      %934 = sbr.rel (0) target = $region41
    $region40: #{tpu_custom_call.1} parent=1 // pred_region
      %935 = dma.done [#allocation6], 512
    $region41: #{tpu_custom_call.1} parent=1 // pred_fallthru
      _
    %936 = vsyncpa [#allocation5], 1
    %937 = vsyncpa [#allocation8], 1
    %938 = vsyncpa [#allocation6], 1

</llo_original>
